<compile_context>
chip_gen: v7x
topology: tpu7x:2x2x1
jax: 0.10.0
libtpu: 0.0.40
codegen_flags: <defaults>
</compile_context>

<pallas_src>
import functools

import jax
import jax.numpy as jnp
from jax.experimental import pallas as pl
from jax.experimental.pallas import tpu as pltpu


def _round_up(x, m):
    return (x + m - 1) // m * m


def _layer_norm(x, gamma, beta, *, d_orig, d_pad, eps):
    """LayerNorm over the last axis of x:(rows, d_pad) f32.

    Padded table columns (>= d_orig) are zero, so sums over d_pad equal sums
    over d_orig; centered values are masked before the variance.
    """
    inv_d = 1.0 / float(d_orig)
    mean = jnp.sum(x, axis=-1, keepdims=True) * inv_d
    diff = x - mean
    if d_pad != d_orig:
        lane = jax.lax.broadcasted_iota(jnp.int32, x.shape, 1)
        diff = jnp.where(lane < d_orig, diff, 0.0)
    var = jnp.sum(diff * diff, axis=-1, keepdims=True) * inv_d
    y = diff * jax.lax.rsqrt(var + eps)
    return y * gamma + beta


# --------------------------------------------------------------------------
# Path 1: VMEM-resident table, one-hot MXU gather.
# --------------------------------------------------------------------------
def _embed_vmem_kernel(ids_ref, table_ref, gamma_ref, beta_ref, out_ref, *,
                       d_orig, d_pad, v_pad, norm, eps):
    ids = ids_ref[...]                                        # (tn, 1) int32
    tn = ids.shape[0]
    vocab_iota = jax.lax.broadcasted_iota(jnp.int32, (tn, v_pad), 1)
    onehot = (ids == vocab_iota).astype(table_ref.dtype)      # (tn, v_pad)
    # One-hot gather on the MXU.  precision=HIGHEST keeps the f32 row
    # selection exact (products are 1.0 * x accumulated in f32).
    x = jnp.dot(onehot, table_ref[...],
                preferred_element_type=jnp.float32,
                precision=jax.lax.Precision.HIGHEST)          # (tn, d_pad) f32
    if norm:
        y = _layer_norm(x, gamma_ref[...], beta_ref[...],
                        d_orig=d_orig, d_pad=d_pad, eps=eps)
    else:
        y = x
    # GaussianNoise / Dropout: identity in eval mode (noise=0.0, p=0.0).
    # TODO(synk): training-mode noise/dropout (pltpu.prng_*) not implemented.
    out_ref[...] = y.astype(out_ref.dtype)


# --------------------------------------------------------------------------
# Path 2: HBM-resident table, manual DMA row gather (large vocab).
# --------------------------------------------------------------------------
def _embed_hbm_kernel(ids_ref, table_ref, gamma_ref, beta_ref, out_ref,
                      rows_ref, sem_ref, *, tn, chunk, d_orig, d_pad, norm, eps):
    step = pl.program_id(0)
    base = step * tn
    n_chunks = tn // chunk

    def issue_chunk(c):
        # One row DMA per token of chunk c; all of them signal sem[c].
        @pl.loop(0, chunk)
        def _(r):
            row = c * chunk + r
            tok = ids_ref[base + row]
            pltpu.make_async_copy(table_ref.at[tok],
                                  rows_ref.at[row],
                                  sem_ref.at[c]).start()

    def wait_chunk(c):
        # Single chunk-sized wait: this descriptor spans `chunk` rows, so its
        # byte count equals the sum of the `chunk` row DMAs issued on sem[c].
        # NOTE: issue/wait sizes are intentionally coupled -- both use the
        # padded row width d_pad in the table's native dtype.
        pltpu.make_async_copy(table_ref.at[pl.ds(0, chunk)],
                              rows_ref.at[pl.ds(c * chunk, chunk)],
                              sem_ref.at[c]).wait()

    if norm:
        gamma = gamma_ref[...]                                # (1, d_pad)
        beta = beta_ref[...]                                  # (1, d_pad)

    # Prime two chunks, then keep a bounded prefetch depth of 2: while chunk c
    # is being normalized, the DMAs of chunks c+1 and c+2 are in flight.
    issue_chunk(0)
    if n_chunks > 1:
        issue_chunk(1)
    for c in range(n_chunks):              # static unroll, n_chunks is small
        if c + 2 < n_chunks:
            issue_chunk(c + 2)
        wait_chunk(c)

        x = rows_ref[pl.ds(c * chunk, chunk), :].astype(jnp.float32)
        if norm:
            y = _layer_norm(x, gamma, beta, d_orig=d_orig, d_pad=d_pad, eps=eps)
        else:
            y = x
        # GaussianNoise / Dropout: identity in eval mode (noise=0.0, p=0.0).
        out_ref[pl.ds(c * chunk, chunk), :] = y.astype(out_ref.dtype)


# --------------------------------------------------------------------------
# Wrappers.
# --------------------------------------------------------------------------
def prepare_embed_params(table, gamma=None, beta=None):
    """One-time weight prep (init time, NOT per forward call): zero-pad D up
    to a lane multiple (128) and V up to a sublane multiple (8).  The table
    keeps its native dtype (bf16 tables are gathered as bf16)."""
    V, D = table.shape
    d_pad = _round_up(D, 128)
    v_pad = _round_up(V, 8)
    table_p = jnp.pad(table, ((0, v_pad - V), (0, d_pad - D)))
    gamma = jnp.ones((D,), jnp.float32) if gamma is None else gamma.astype(jnp.float32)
    beta = jnp.zeros((D,), jnp.float32) if beta is None else beta.astype(jnp.float32)
    gamma_p = jnp.pad(gamma, (0, d_pad - D)).reshape(1, d_pad)
    beta_p = jnp.pad(beta, (0, d_pad - D)).reshape(1, d_pad)
    return table_p, gamma_p, beta_p, (V, D)


def embed_forward(x, table_p, gamma_p, beta_p, orig_dims, *, norm=False,
                  eps=1e-5, tn=256, chunk=64, out_dtype=None,
                  vmem_table_bytes=8 * 1024 * 1024, force_hbm_gather=False):
    """Eval-mode Embed.forward: (B, S) int ids -> (B, S, D).

    table_p / gamma_p / beta_p come from prepare_embed_params (padded once).
    Uses the VMEM-resident one-hot gather when the padded table fits the
    conservative `vmem_table_bytes` budget (safe on v7x's 64 MiB VMEM);
    otherwise falls back to the HBM DMA row-gather path.
    """
    V, D = orig_dims
    v_pad, d_pad = table_p.shape
    B, S = x.shape
    N = B * S
    assert tn % chunk == 0 and chunk % 8 == 0 and tn % 8 == 0
    n_pad = _round_up(N, tn)

    # Out-of-range ids are clamped (PyTorch nn.Embedding would raise); padded
    # tokens in the last tile gather row 0 and are sliced off below.
    ids = jnp.clip(x.reshape(-1).astype(jnp.int32), 0, V - 1)
    if n_pad != N:
        ids = jnp.pad(ids, (0, n_pad - N))

    if out_dtype is None:
        out_dtype = table_p.dtype
    grid = (n_pad // tn,)
    table_bytes = v_pad * d_pad * table_p.dtype.itemsize
    use_vmem_table = (not force_hbm_gather) and table_bytes <= vmem_table_bytes

    compiler_params = pltpu.CompilerParams(
        dimension_semantics=("parallel",),            # megacore sharding on v7x
        vmem_limit_bytes=32 * 1024 * 1024,            # covers v5e's 16 MiB default
    )

    if use_vmem_table:
        kernel = functools.partial(_embed_vmem_kernel, d_orig=D, d_pad=d_pad,
                                   v_pad=v_pad, norm=norm, eps=eps)
        out = pl.pallas_call(
            kernel,
            out_shape=jax.ShapeDtypeStruct((n_pad, d_pad), out_dtype),
            grid=grid,
            in_specs=[
                pl.BlockSpec((tn, 1), lambda i: (i, 0)),         # ids (per tile)
                pl.BlockSpec((v_pad, d_pad), lambda i: (0, 0)),  # table, VMEM-resident
                pl.BlockSpec((1, d_pad), lambda i: (0, 0)),      # gamma
                pl.BlockSpec((1, d_pad), lambda i: (0, 0)),      # beta
            ],
            out_specs=pl.BlockSpec((tn, d_pad), lambda i: (i, 0)),
            compiler_params=compiler_params,
        )(ids.reshape(n_pad, 1), table_p, gamma_p, beta_p)
    else:
        assert v_pad >= chunk, "chunk-sized wait descriptor needs >= chunk table rows"
        # TODO(synk): for very large B*S, switch ids to a per-tile SMEM block
        # instead of whole-array scalar prefetch to bound SMEM usage.
        kernel = functools.partial(_embed_hbm_kernel, tn=tn, chunk=chunk,
                                   d_orig=D, d_pad=d_pad, norm=norm, eps=eps)
        out = pl.pallas_call(
            kernel,
            out_shape=jax.ShapeDtypeStruct((n_pad, d_pad), out_dtype),
            grid_spec=pltpu.PrefetchScalarGridSpec(
                num_scalar_prefetch=1,                           # ids -> SMEM
                grid=grid,
                in_specs=[
                    pl.BlockSpec(memory_space=pl.ANY),           # table stays in HBM
                    pl.BlockSpec((1, d_pad), lambda i, ids: (0, 0)),   # gamma
                    pl.BlockSpec((1, d_pad), lambda i, ids: (0, 0)),   # beta
                ],
                out_specs=pl.BlockSpec((tn, d_pad), lambda i, ids: (i, 0)),
                scratch_shapes=[
                    pltpu.VMEM((tn, d_pad), table_p.dtype),      # gathered rows
                    pltpu.SemaphoreType.DMA((tn // chunk,)),     # per-chunk DMA sems
                ],
            ),
            compiler_params=compiler_params,
        )(ids, table_p, gamma_p, beta_p)

    if n_pad != N or d_pad != D:
        out = out[:N, :D]
    return out.reshape(B, S, D)


def _reference(x, table, gamma, beta, *, norm, eps=1e-5):
    emb = table[x]                                            # (B, S, D)
    if norm:
        mean = jnp.mean(emb, axis=-1, keepdims=True)
        var = jnp.mean(jnp.square(emb - mean), axis=-1, keepdims=True)
        emb = (emb - mean) * jax.lax.rsqrt(var + eps)
        emb = emb * gamma + beta
    return emb


if __name__ == "__main__":
    B, S = 2, 8          # batch, sequence
    V, D = 64, 32        # num_embeddings, embedding_dim

    key = jax.random.PRNGKey(0)
    k_ids, k_tab, k_g, k_b = jax.random.split(key, 4)

    x = jax.random.randint(k_ids, (B, S), 0, V, dtype=jnp.int32)
    # nn.Embedding default init: N(0, 1)
    table = jax.random.normal(k_tab, (V, D), dtype=jnp.float32)
    # non-trivial LayerNorm affine params to exercise the fused path
    gamma = 1.0 + 0.1 * jax.random.normal(k_g, (D,), dtype=jnp.float32)
    beta = 0.1 * jax.random.normal(k_b, (D,), dtype=jnp.float32)

    # Weight prep happens once at init time, not per forward call.
    table_p, gamma_p, beta_p, dims = prepare_embed_params(table, gamma, beta)

    for norm in (False, True):
        ref = _reference(x, table, gamma, beta, norm=norm)
        for force_hbm in (False, True):       # exercise both gather paths
            out = embed_forward(x, table_p, gamma_p, beta_p, dims,
                                norm=norm, force_hbm_gather=force_hbm)
            out = jax.block_until_ready(out)
            assert out.shape == (B, S, D)
            assert jnp.allclose(out, ref, atol=2e-5, rtol=2e-5), \
                f"mismatch (norm={norm}, hbm_gather={force_hbm})"

    print("KERNEL_OK")
</pallas_src>

<mosaic_0001>
module attributes {stable_mosaic.version = 11 : i64} {
  func.func @_embed_vmem_kernel(%arg0: i32, %arg1: memref<256x1xi32, #tpu.memory_space<vmem>>, %arg2: memref<64x128xf32, #tpu.memory_space<vmem>>, %arg3: memref<1x128xf32, #tpu.memory_space<vmem>>, %arg4: memref<1x128xf32, #tpu.memory_space<vmem>>, %arg5: memref<256x128xf32, #tpu.memory_space<vmem>>) attributes {dimension_semantics = [#tpu.dimension_semantics<parallel>], iteration_bounds = array<i64: 1>, scalar_prefetch = 0 : i64, scratch_operands = 0 : i64, tpu.core_type = #tpu.core_type<tc>, window_params = [{transform_indices = @transform_0, window_bounds = array<i64: 256, 1>}, {pipeline_mode = #tpu.pipeline_mode<synchronous>, transform_indices = @transform_1, window_bounds = array<i64: 64, 128>}, {pipeline_mode = #tpu.pipeline_mode<synchronous>, transform_indices = @transform_2, window_bounds = array<i64: 1, 128>}, {pipeline_mode = #tpu.pipeline_mode<synchronous>, transform_indices = @transform_3, window_bounds = array<i64: 1, 128>}, {transform_indices = @transform_4, window_bounds = array<i64: 256, 128>}]} {
    %c0 = arith.constant 0 : index
    %c0_0 = arith.constant 0 : index
    %0 = vector.load %arg1[%c0, %c0_0] : memref<256x1xi32, #tpu.memory_space<vmem>>, vector<256x1xi32>
    %1 = tpu.iota {dimensions = array<i32: 1>} : vector<256x64xi32>
    %2 = vector.broadcast %0 : vector<256x1xi32> to vector<256x64xi32>
    %3 = arith.cmpi eq, %2, %1 : vector<256x64xi32>
    %4 = arith.extui %3 : vector<256x64xi1> to vector<256x64xi32>
    %5 = arith.sitofp %4 : vector<256x64xi32> to vector<256x64xf32>
    %c0_1 = arith.constant 0 : index
    %c0_2 = arith.constant 0 : index
    %6 = vector.load %arg2[%c0_1, %c0_2] : memref<64x128xf32, #tpu.memory_space<vmem>>, vector<64x128xf32>
    %cst = arith.constant dense<0.000000e+00> : vector<256x128xf32>
    %7 = tpu.matmul %5, %6, %cst {dimension_numbers = #tpu.dot_dimension_numbers<[1], [0], [0], [1], [0, 0, 1, 1], [], []>, precision = #tpu.contract_precision<fp32>} : vector<256x64xf32>, vector<64x128xf32>, vector<256x128xf32> -> vector<256x128xf32>
    %c0_3 = arith.constant 0 : index
    %c0_4 = arith.constant 0 : index
    %8 = vector.load %arg5[%c0_3, %c0_4] : memref<256x128xf32, #tpu.memory_space<vmem>>, vector<256x128xf32>
    tpu.vector_store %arg5[%c0_3, %c0_4], %7 {strides = array<i32>} : memref<256x128xf32, #tpu.memory_space<vmem>>, vector<256x128xf32>,
    return
  }
  func.func @transform_0(%arg0: i32) -> (i32, i32) {
    %c0_i32 = arith.constant 0 : i32
    %c0_i32_0 = arith.constant 0 : i32
    return %arg0, %c0_i32 : i32, i32
  }
  func.func @transform_1(%arg0: i32) -> (i32, i32) {
    %c0_i32 = arith.constant 0 : i32
    %c0_i32_0 = arith.constant 0 : i32
    %c0_i32_1 = arith.constant 0 : i32
    return %c0_i32, %c0_i32_0 : i32, i32
  }
  func.func @transform_2(%arg0: i32) -> (i32, i32) {
    %c0_i32 = arith.constant 0 : i32
    %c0_i32_0 = arith.constant 0 : i32
    %c0_i32_1 = arith.constant 0 : i32
    return %c0_i32, %c0_i32_0 : i32, i32
  }
  func.func @transform_3(%arg0: i32) -> (i32, i32) {
    %c0_i32 = arith.constant 0 : i32
    %c0_i32_0 = arith.constant 0 : i32
    %c0_i32_1 = arith.constant 0 : i32
    return %c0_i32, %c0_i32_0 : i32, i32
  }
  func.func @transform_4(%arg0: i32) -> (i32, i32) {
    %c0_i32 = arith.constant 0 : i32
    %c0_i32_0 = arith.constant 0 : i32
    return %arg0, %c0_i32 : i32, i32
  }
}

</mosaic_0001>

<llo_original>
// kernel: tpu_custom_call.1
$region0: #{tpu_custom_call.1}
  #allocation0 [shape = 'u32[]', space=smem, size = 0x4, offset = 0x4, fixed_abs, tag = 'smem constant byte address 0x4 - core index']
  #allocation1 [shape = 'u32[144,128]{1,0:T(1,128)}', space=vmem, size = 0x12000, scoped, tag = 'internal scratch']
  %s0 = inlined_call_operand.vmem [shape: s32[256,1], index: 0, kind: input, shape index: {}]
  %s1 = inlined_call_operand.vmem [shape: f32[64,128], index: 1, kind: input, shape index: {}]
  %s2 = inlined_call_operand.vmem [shape: f32[1,128], index: 2, kind: input, shape index: {}]
  %s3 = inlined_call_operand.vmem [shape: f32[1,128], index: 3, kind: input, shape index: {}]
  %s4 = inlined_call_operand.hbm [shape: f32[256,128], index: 4, kind: output, shape index: {}]
  %s5 = sld [smem:[#allocation0]]
  $region26: #{tpu_custom_call.1} parent=0
    _
  %s7 = ssub.s32 1, %s5
  %s8 = scalar_select 0, %s7, %s5
  $region1: #{tpu_custom_call.1} parent=0
    #allocation2 [shape = 'u8[131072]{0}', space=vmem, size = 0x20000, scoped, tag = 'output window, operand 0, single buffered']
    #allocation3 [shape = 's32[1]{0}', space=sflag, size = 0x4, scoped, tag = 'scoped memory for tpu_custom_call.1']
    %9 = vsyncpa [#allocation3], 0
    // Predicated region
    $region2: #{tpu_custom_call.1} parent=1 // pred_check
      _
    $region3: #{tpu_custom_call.1} parent=1 // pred_check_branch
      %11 = sbr.rel (0) target = $region5
    $region4: #{tpu_custom_call.1} parent=1 // pred_region
      _
    $region5: #{tpu_custom_call.1} parent=1 // pred_fallthru
      _
    // Predicated region
    $region6: #{tpu_custom_call.1} parent=1 // pred_check
      _
    $region7: #{tpu_custom_call.1} parent=1 // pred_check_branch
      %13 = sbr.rel (0) target = $region9
    $region8: #{tpu_custom_call.1} parent=1 // pred_region
      _
    $region9: #{tpu_custom_call.1} parent=1 // pred_fallthru
      _
    // Predicated region
    $region10: #{tpu_custom_call.1} parent=1 // pred_check
      _
    $region11: #{tpu_custom_call.1} parent=1 // pred_check_branch
      %15 = sbr.rel (0) target = $region13
    $region12: #{tpu_custom_call.1} parent=1 // pred_region
      _
    $region13: #{tpu_custom_call.1} parent=1 // pred_fallthru
      _
    // Predicated region
    $region14: #{tpu_custom_call.1} parent=1 // pred_check
      _
    $region15: #{tpu_custom_call.1} parent=1 // pred_check_branch
      %17 = sbr.rel (0) target = $region17
    $region16: #{tpu_custom_call.1} parent=1 // pred_region
      _
    $region17: #{tpu_custom_call.1} parent=1 // pred_fallthru
      _
    %v18 = vld [vmem:[%s0] sm:$0xff]
    %v19 = vld [vmem:[%s0 + $0x8] sm:$0xff]
    %v20 = vld [vmem:[%s0 + $0x10] sm:$0xff]
    %v21 = vld [vmem:[%s0 + $0x18] sm:$0xff]
    %v22 = vld [vmem:[%s0 + $0x20] sm:$0xff]
    %v23 = vld [vmem:[%s0 + $0x28] sm:$0xff]
    %v24 = vld [vmem:[%s0 + $0x30] sm:$0xff]
    %v25 = vld [vmem:[%s0 + $0x38] sm:$0xff]
    %v26 = vld [vmem:[%s0 + $0x40] sm:$0xff]
    %v27 = vld [vmem:[%s0 + $0x48] sm:$0xff]
    %v28 = vld [vmem:[%s0 + $0x50] sm:$0xff]
    %v29 = vld [vmem:[%s0 + $0x58] sm:$0xff]
    %v30 = vld [vmem:[%s0 + $0x60] sm:$0xff]
    %v31 = vld [vmem:[%s0 + $0x68] sm:$0xff]
    %v32 = vld [vmem:[%s0 + $0x70] sm:$0xff]
    %v33 = vld [vmem:[%s0 + $0x78] sm:$0xff]
    %v34 = vld [vmem:[%s0 + $0x80] sm:$0xff]
    %v35 = vld [vmem:[%s0 + $0x88] sm:$0xff]
    %v36 = vld [vmem:[%s0 + $0x90] sm:$0xff]
    %v37 = vld [vmem:[%s0 + $0x98] sm:$0xff]
    %v38 = vld [vmem:[%s0 + $0xa0] sm:$0xff]
    %v39 = vld [vmem:[%s0 + $0xa8] sm:$0xff]
    %v40 = vld [vmem:[%s0 + $0xb0] sm:$0xff]
    %v41 = vld [vmem:[%s0 + $0xb8] sm:$0xff]
    %v42 = vld [vmem:[%s0 + $0xc0] sm:$0xff]
    %v43 = vld [vmem:[%s0 + $0xc8] sm:$0xff]
    %v44 = vld [vmem:[%s0 + $0xd0] sm:$0xff]
    %v45 = vld [vmem:[%s0 + $0xd8] sm:$0xff]
    %v46 = vld [vmem:[%s0 + $0xe0] sm:$0xff]
    %v47 = vld [vmem:[%s0 + $0xe8] sm:$0xff]
    %v48 = vld [vmem:[%s0 + $0xf0] sm:$0xff]
    %v49 = vld [vmem:[%s0 + $0xf8] sm:$0xff]
    %v50 = vlaneseq
    %v51 = vand.u32 %v50, 127
    %52 = vset.pattern.permute.xlu0 0
    %53 = vperm.xlu0 %52, %v18
    %v54 = vpop.permute.xlu0 %53
    %55 = vset.pattern.permute.xlu0 0
    %56 = vperm.xlu0 %55, %v19
    %v57 = vpop.permute.xlu0 %56
    %58 = vset.pattern.permute.xlu0 0
    %59 = vperm.xlu0 %58, %v20
    %v60 = vpop.permute.xlu0 %59
    %61 = vset.pattern.permute.xlu0 0
    %62 = vperm.xlu0 %61, %v21
    %v63 = vpop.permute.xlu0 %62
    %64 = vset.pattern.permute.xlu0 0
    %65 = vperm.xlu0 %64, %v22
    %v66 = vpop.permute.xlu0 %65
    %67 = vset.pattern.permute.xlu0 0
    %68 = vperm.xlu0 %67, %v23
    %v69 = vpop.permute.xlu0 %68
    %70 = vset.pattern.permute.xlu0 0
    %71 = vperm.xlu0 %70, %v24
    %v72 = vpop.permute.xlu0 %71
    %73 = vset.pattern.permute.xlu0 0
    %74 = vperm.xlu0 %73, %v25
    %v75 = vpop.permute.xlu0 %74
    %76 = vset.pattern.permute.xlu0 0
    %77 = vperm.xlu0 %76, %v26
    %v78 = vpop.permute.xlu0 %77
    %79 = vset.pattern.permute.xlu0 0
    %80 = vperm.xlu0 %79, %v27
    %v81 = vpop.permute.xlu0 %80
    %82 = vset.pattern.permute.xlu0 0
    %83 = vperm.xlu0 %82, %v28
    %v84 = vpop.permute.xlu0 %83
    %85 = vset.pattern.permute.xlu0 0
    %86 = vperm.xlu0 %85, %v29
    %v87 = vpop.permute.xlu0 %86
    %88 = vset.pattern.permute.xlu0 0
    %89 = vperm.xlu0 %88, %v30
    %v90 = vpop.permute.xlu0 %89
    %91 = vset.pattern.permute.xlu0 0
    %92 = vperm.xlu0 %91, %v31
    %v93 = vpop.permute.xlu0 %92
    %94 = vset.pattern.permute.xlu0 0
    %95 = vperm.xlu0 %94, %v32
    %v96 = vpop.permute.xlu0 %95
    %97 = vset.pattern.permute.xlu0 0
    %98 = vperm.xlu0 %97, %v33
    %v99 = vpop.permute.xlu0 %98
    %100 = vset.pattern.permute.xlu0 0
    %101 = vperm.xlu0 %100, %v34
    %v102 = vpop.permute.xlu0 %101
    %103 = vset.pattern.permute.xlu0 0
    %104 = vperm.xlu0 %103, %v35
    %v105 = vpop.permute.xlu0 %104
    %106 = vset.pattern.permute.xlu0 0
    %107 = vperm.xlu0 %106, %v36
    %v108 = vpop.permute.xlu0 %107
    %109 = vset.pattern.permute.xlu0 0
    %110 = vperm.xlu0 %109, %v37
    %v111 = vpop.permute.xlu0 %110
    %112 = vset.pattern.permute.xlu0 0
    %113 = vperm.xlu0 %112, %v38
    %v114 = vpop.permute.xlu0 %113
    %115 = vset.pattern.permute.xlu0 0
    %116 = vperm.xlu0 %115, %v39
    %v117 = vpop.permute.xlu0 %116
    %118 = vset.pattern.permute.xlu0 0
    %119 = vperm.xlu0 %118, %v40
    %v120 = vpop.permute.xlu0 %119
    %121 = vset.pattern.permute.xlu0 0
    %122 = vperm.xlu0 %121, %v41
    %v123 = vpop.permute.xlu0 %122
    %124 = vset.pattern.permute.xlu0 0
    %125 = vperm.xlu0 %124, %v42
    %v126 = vpop.permute.xlu0 %125
    %127 = vset.pattern.permute.xlu0 0
    %128 = vperm.xlu0 %127, %v43
    %v129 = vpop.permute.xlu0 %128
    %130 = vset.pattern.permute.xlu0 0
    %131 = vperm.xlu0 %130, %v44
    %v132 = vpop.permute.xlu0 %131
    %133 = vset.pattern.permute.xlu0 0
    %134 = vperm.xlu0 %133, %v45
    %v135 = vpop.permute.xlu0 %134
    %136 = vset.pattern.permute.xlu0 0
    %137 = vperm.xlu0 %136, %v46
    %v138 = vpop.permute.xlu0 %137
    %139 = vset.pattern.permute.xlu0 0
    %140 = vperm.xlu0 %139, %v47
    %v141 = vpop.permute.xlu0 %140
    %142 = vset.pattern.permute.xlu0 0
    %143 = vperm.xlu0 %142, %v48
    %v144 = vpop.permute.xlu0 %143
    %145 = vset.pattern.permute.xlu0 0
    %146 = vperm.xlu0 %145, %v49
    %v147 = vpop.permute.xlu0 %146
    %vm148 = vcmp.eq.s32.totalorder %v54, %v51
    %vm149 = vcmp.eq.s32.totalorder %v57, %v51
    %vm150 = vcmp.eq.s32.totalorder %v60, %v51
    %vm151 = vcmp.eq.s32.totalorder %v63, %v51
    %vm152 = vcmp.eq.s32.totalorder %v66, %v51
    %vm153 = vcmp.eq.s32.totalorder %v69, %v51
    %vm154 = vcmp.eq.s32.totalorder %v72, %v51
    %vm155 = vcmp.eq.s32.totalorder %v75, %v51
    %vm156 = vcmp.eq.s32.totalorder %v78, %v51
    %vm157 = vcmp.eq.s32.totalorder %v81, %v51
    %vm158 = vcmp.eq.s32.totalorder %v84, %v51
    %vm159 = vcmp.eq.s32.totalorder %v87, %v51
    %vm160 = vcmp.eq.s32.totalorder %v90, %v51
    %vm161 = vcmp.eq.s32.totalorder %v93, %v51
    %vm162 = vcmp.eq.s32.totalorder %v96, %v51
    %vm163 = vcmp.eq.s32.totalorder %v99, %v51
    %vm164 = vcmp.eq.s32.totalorder %v102, %v51
    %vm165 = vcmp.eq.s32.totalorder %v105, %v51
    %vm166 = vcmp.eq.s32.totalorder %v108, %v51
    %vm167 = vcmp.eq.s32.totalorder %v111, %v51
    %vm168 = vcmp.eq.s32.totalorder %v114, %v51
    %vm169 = vcmp.eq.s32.totalorder %v117, %v51
    %vm170 = vcmp.eq.s32.totalorder %v120, %v51
    %vm171 = vcmp.eq.s32.totalorder %v123, %v51
    %vm172 = vcmp.eq.s32.totalorder %v126, %v51
    %vm173 = vcmp.eq.s32.totalorder %v129, %v51
    %vm174 = vcmp.eq.s32.totalorder %v132, %v51
    %vm175 = vcmp.eq.s32.totalorder %v135, %v51
    %vm176 = vcmp.eq.s32.totalorder %v138, %v51
    %vm177 = vcmp.eq.s32.totalorder %v141, %v51
    %vm178 = vcmp.eq.s32.totalorder %v144, %v51
    %vm179 = vcmp.eq.s32.totalorder %v147, %v51
    %v180 = vsel %vm148, 1, 0
    %v181 = vsel %vm149, 1, 0
    %v182 = vsel %vm150, 1, 0
    %v183 = vsel %vm151, 1, 0
    %v184 = vsel %vm152, 1, 0
    %v185 = vsel %vm153, 1, 0
    %v186 = vsel %vm154, 1, 0
    %v187 = vsel %vm155, 1, 0
    %v188 = vsel %vm156, 1, 0
    %v189 = vsel %vm157, 1, 0
    %v190 = vsel %vm158, 1, 0
    %v191 = vsel %vm159, 1, 0
    %v192 = vsel %vm160, 1, 0
    %v193 = vsel %vm161, 1, 0
    %v194 = vsel %vm162, 1, 0
    %v195 = vsel %vm163, 1, 0
    %v196 = vsel %vm164, 1, 0
    %v197 = vsel %vm165, 1, 0
    %v198 = vsel %vm166, 1, 0
    %v199 = vsel %vm167, 1, 0
    %v200 = vsel %vm168, 1, 0
    %v201 = vsel %vm169, 1, 0
    %v202 = vsel %vm170, 1, 0
    %v203 = vsel %vm171, 1, 0
    %v204 = vsel %vm172, 1, 0
    %v205 = vsel %vm173, 1, 0
    %v206 = vsel %vm174, 1, 0
    %v207 = vsel %vm175, 1, 0
    %v208 = vsel %vm176, 1, 0
    %v209 = vsel %vm177, 1, 0
    %v210 = vsel %vm178, 1, 0
    %v211 = vsel %vm179, 1, 0
    %v212 = vcvt.s32.f32 %v180
    %v213 = vcvt.s32.f32 %v181
    %v214 = vcvt.s32.f32 %v182
    %v215 = vcvt.s32.f32 %v183
    %v216 = vcvt.s32.f32 %v184
    %v217 = vcvt.s32.f32 %v185
    %v218 = vcvt.s32.f32 %v186
    %v219 = vcvt.s32.f32 %v187
    %v220 = vcvt.s32.f32 %v188
    %v221 = vcvt.s32.f32 %v189
    %v222 = vcvt.s32.f32 %v190
    %v223 = vcvt.s32.f32 %v191
    %v224 = vcvt.s32.f32 %v192
    %v225 = vcvt.s32.f32 %v193
    %v226 = vcvt.s32.f32 %v194
    %v227 = vcvt.s32.f32 %v195
    %v228 = vcvt.s32.f32 %v196
    %v229 = vcvt.s32.f32 %v197
    %v230 = vcvt.s32.f32 %v198
    %v231 = vcvt.s32.f32 %v199
    %v232 = vcvt.s32.f32 %v200
    %v233 = vcvt.s32.f32 %v201
    %v234 = vcvt.s32.f32 %v202
    %v235 = vcvt.s32.f32 %v203
    %v236 = vcvt.s32.f32 %v204
    %v237 = vcvt.s32.f32 %v205
    %v238 = vcvt.s32.f32 %v206
    %v239 = vcvt.s32.f32 %v207
    %v240 = vcvt.s32.f32 %v208
    %v241 = vcvt.s32.f32 %v209
    %v242 = vcvt.s32.f32 %v210
    %v243 = vcvt.s32.f32 %v211
    %v244 = vld [vmem:[%s1] sm:$0xff]
    %v245 = vld [vmem:[%s1 + $0x8] sm:$0xff]
    %v246 = vld [vmem:[%s1 + $0x10] sm:$0xff]
    %v247 = vld [vmem:[%s1 + $0x18] sm:$0xff]
    %v248 = vld [vmem:[%s1 + $0x20] sm:$0xff]
    %v249 = vld [vmem:[%s1 + $0x28] sm:$0xff]
    %v250 = vld [vmem:[%s1 + $0x30] sm:$0xff]
    %v251 = vld [vmem:[%s1 + $0x38] sm:$0xff]
    %vm252 = vcmask 523264
    %v254 = vsel %vm252, %v212, 0
    %v257 = vsel %vm252, %v213, 0
    %v260 = vsel %vm252, %v214, 0
    %v263 = vsel %vm252, %v215, 0
    %v266 = vsel %vm252, %v216, 0
    %v269 = vsel %vm252, %v217, 0
    %v272 = vsel %vm252, %v218, 0
    %v275 = vsel %vm252, %v219, 0
    %v278 = vsel %vm252, %v220, 0
    %v281 = vsel %vm252, %v221, 0
    %v284 = vsel %vm252, %v222, 0
    %v287 = vsel %vm252, %v223, 0
    %v290 = vsel %vm252, %v224, 0
    %v293 = vsel %vm252, %v225, 0
    %v296 = vsel %vm252, %v226, 0
    %v299 = vsel %vm252, %v227, 0
    %v302 = vsel %vm252, %v228, 0
    %v305 = vsel %vm252, %v229, 0
    %v308 = vsel %vm252, %v230, 0
    %v311 = vsel %vm252, %v231, 0
    %v314 = vsel %vm252, %v232, 0
    %v317 = vsel %vm252, %v233, 0
    %v320 = vsel %vm252, %v234, 0
    %v323 = vsel %vm252, %v235, 0
    %v326 = vsel %vm252, %v236, 0
    %v329 = vsel %vm252, %v237, 0
    %v332 = vsel %vm252, %v238, 0
    %v335 = vsel %vm252, %v239, 0
    %v338 = vsel %vm252, %v240, 0
    %v341 = vsel %vm252, %v241, 0
    %v344 = vsel %vm252, %v242, 0
    %v347 = vsel %vm252, %v243, 0
    %349 = vmatprep.subr.mxu0 0.0
    %v350 = vand.u32 %v244, 4294901760
    %351 = vmatpush1.msra.mxu0 %v350
    %352 = vmatprep.subr.mxu0 0.0
    %v353 = vand.u32 %v245, 4294901760
    %354 = vmatpush1.msra.mxu0 %v353
    %355 = vmatprep.subr.mxu0 0.0
    %v356 = vand.u32 %v246, 4294901760
    %357 = vmatpush1.msra.mxu0 %v356
    %358 = vmatprep.subr.mxu0 0.0
    %v359 = vand.u32 %v247, 4294901760
    %360 = vmatpush1.msra.mxu0 %v359
    %361 = vmatprep.subr.mxu0 0.0
    %v362 = vand.u32 %v248, 4294901760
    %363 = vmatpush1.msra.mxu0 %v362
    %364 = vmatprep.subr.mxu0 0.0
    %v365 = vand.u32 %v249, 4294901760
    %366 = vmatpush1.msra.mxu0 %v365
    %367 = vmatprep.subr.mxu0 0.0
    %v368 = vand.u32 %v250, 4294901760
    %369 = vmatpush1.msra.mxu0 %v368
    %370 = vmatprep.subr.mxu0 0.0
    %v371 = vand.u32 %v251, 4294901760
    %372 = vmatpush1.msra.mxu0 %v371
    %373 = vmatprep.subr.mxu0 0.0
    %374 = vmatpush1.msra.mxu0 0.0
    %375 = vmatprep.subr.mxu0 0.0
    %376 = vmatpush1.msra.mxu0 0.0
    %377 = vmatprep.subr.mxu0 0.0
    %378 = vmatpush1.msra.mxu0 0.0
    %379 = vmatprep.subr.mxu0 0.0
    %380 = vmatpush1.msra.mxu0 0.0
    %381 = vmatprep.subr.mxu0 0.0
    %382 = vmatpush1.msra.mxu0 0.0
    %383 = vmatprep.subr.mxu0 0.0
    %384 = vmatpush1.msra.mxu0 0.0
    %385 = vmatprep.subr.mxu0 0.0
    %386 = vmatpush1.msra.mxu0 0.0
    %387 = vmatprep.subr.mxu0 0.0
    %388 = vmatpush1.msra.mxu0 0.0
    %389 = vmatprep.subr.mxu0 0.0
    %390 = vmatpush1.msra.mxu0 0.0
    %391 = vmatprep.subr.mxu0 0.0
    %392 = vmatpush1.msra.mxu0 0.0
    %393 = vmatprep.subr.mxu0 0.0
    %394 = vmatpush1.msra.mxu0 0.0
    %395 = vmatprep.subr.mxu0 0.0
    %396 = vmatpush1.msra.mxu0 0.0
    %397 = vmatprep.subr.mxu0 0.0
    %398 = vmatpush1.msra.mxu0 0.0
    %399 = vmatprep.subr.mxu0 0.0
    %400 = vmatpush1.msra.mxu0 0.0
    %401 = vmatprep.subr.mxu0 0.0
    %402 = vmatpush1.msra.mxu0 0.0
    %403 = vmatprep.subr.mxu0 0.0
    %404 = vmatpush1.msra.mxu0 0.0
    %405 = vmatprep.subr.mxu0 0.0
    %406 = vmatpush1.msra.mxu0 0.0
    %407 = vmatprep.subr.mxu0 0.0
    %408 = vmatpush1.msra.mxu0 0.0
    %409 = vmatprep.subr.mxu0 0.0
    %410 = vmatpush1.msra.mxu0 0.0
    %411 = vmatprep.subr.mxu0 0.0
    %412 = vmatpush1.msra.mxu0 0.0
    %413 = vmatprep.subr.mxu0 0.0
    %414 = vmatpush1.msra.mxu0 0.0
    %415 = vmatprep.subr.mxu0 0.0
    %416 = vmatpush1.msra.mxu0 0.0
    %417 = vmatprep.subr.mxu0 0.0
    %418 = vmatpush1.msra.mxu0 0.0
    %419 = vmatprep.subr.mxu0 0.0
    %420 = vmatpush1.msra.mxu0 0.0
    %421 = vmatprep.mubr.f32.mxu0 0.0
    %v422 = vand.u32 %v254, 4294901760
    %v423 = vsub.f32 %v254, %v422
    %v424 = vand.u32 %v423, 4294901760
    %v425 = vsub.f32 %v423, %v424
    %v426 = vand.u32 %v425, 4294901760
    %427 = vmatmul.mubr.f32.gmra.mrb[0].mxu0 %v426
    %v428 = vpop.f32.mrb[0].mxu0
    %v429 = vadd.f32 0.0, %v428
    %v430 = vpop.f32.mrb[0].mxu0
    %431 = vmatprep.mubr.f32.mxu0 0.0
    %v432 = vand.u32 %v257, 4294901760
    %v433 = vsub.f32 %v257, %v432
    %v434 = vand.u32 %v433, 4294901760
    %v435 = vsub.f32 %v433, %v434
    %v436 = vand.u32 %v435, 4294901760
    %437 = vmatmul.mubr.f32.gmra.mrb[0].mxu0 %v436
    %v438 = vpop.f32.mrb[0].mxu0
    %v439 = vadd.f32 0.0, %v438
    %v440 = vpop.f32.mrb[0].mxu0
    %441 = vmatprep.mubr.f32.mxu0 0.0
    %v442 = vand.u32 %v260, 4294901760
    %v443 = vsub.f32 %v260, %v442
    %v444 = vand.u32 %v443, 4294901760
    %v445 = vsub.f32 %v443, %v444
    %v446 = vand.u32 %v445, 4294901760
    %447 = vmatmul.mubr.f32.gmra.mrb[0].mxu0 %v446
    %v448 = vpop.f32.mrb[0].mxu0
    %v449 = vadd.f32 0.0, %v448
    %v450 = vpop.f32.mrb[0].mxu0
    %451 = vmatprep.mubr.f32.mxu0 0.0
    %v452 = vand.u32 %v263, 4294901760
    %v453 = vsub.f32 %v263, %v452
    %v454 = vand.u32 %v453, 4294901760
    %v455 = vsub.f32 %v453, %v454
    %v456 = vand.u32 %v455, 4294901760
    %457 = vmatmul.mubr.f32.gmra.mrb[0].mxu0 %v456
    %v458 = vpop.f32.mrb[0].mxu0
    %v459 = vadd.f32 0.0, %v458
    %v460 = vpop.f32.mrb[0].mxu0
    %461 = vmatprep.mubr.f32.mxu0 0.0
    %v462 = vand.u32 %v266, 4294901760
    %v463 = vsub.f32 %v266, %v462
    %v464 = vand.u32 %v463, 4294901760
    %v465 = vsub.f32 %v463, %v464
    %v466 = vand.u32 %v465, 4294901760
    %467 = vmatmul.mubr.f32.gmra.mrb[0].mxu0 %v466
    %v468 = vpop.f32.mrb[0].mxu0
    %v469 = vadd.f32 0.0, %v468
    %v470 = vpop.f32.mrb[0].mxu0
    %471 = vmatprep.mubr.f32.mxu0 0.0
    %v472 = vand.u32 %v269, 4294901760
    %v473 = vsub.f32 %v269, %v472
    %v474 = vand.u32 %v473, 4294901760
    %v475 = vsub.f32 %v473, %v474
    %v476 = vand.u32 %v475, 4294901760
    %477 = vmatmul.mubr.f32.gmra.mrb[0].mxu0 %v476
    %v478 = vpop.f32.mrb[0].mxu0
    %v479 = vadd.f32 0.0, %v478
    %v480 = vpop.f32.mrb[0].mxu0
    %481 = vmatprep.mubr.f32.mxu0 0.0
    %v482 = vand.u32 %v272, 4294901760
    %v483 = vsub.f32 %v272, %v482
    %v484 = vand.u32 %v483, 4294901760
    %v485 = vsub.f32 %v483, %v484
    %v486 = vand.u32 %v485, 4294901760
    %487 = vmatmul.mubr.f32.gmra.mrb[0].mxu0 %v486
    %v488 = vpop.f32.mrb[0].mxu0
    %v489 = vadd.f32 0.0, %v488
    %v490 = vpop.f32.mrb[0].mxu0
    %491 = vmatprep.mubr.f32.mxu0 0.0
    %v492 = vand.u32 %v275, 4294901760
    %v493 = vsub.f32 %v275, %v492
    %v494 = vand.u32 %v493, 4294901760
    %v495 = vsub.f32 %v493, %v494
    %v496 = vand.u32 %v495, 4294901760
    %497 = vmatmul.mubr.f32.gmra.mrb[0].mxu0 %v496
    %v498 = vpop.f32.mrb[0].mxu0
    %v499 = vadd.f32 0.0, %v498
    %v500 = vpop.f32.mrb[0].mxu0
    %501 = vmatprep.mubr.f32.mxu0 0.0
    %v502 = vand.u32 %v278, 4294901760
    %v503 = vsub.f32 %v278, %v502
    %v504 = vand.u32 %v503, 4294901760
    %v505 = vsub.f32 %v503, %v504
    %v506 = vand.u32 %v505, 4294901760
    %507 = vmatmul.mubr.f32.gmra.mrb[0].mxu0 %v506
    %v508 = vpop.f32.mrb[0].mxu0
    %v509 = vadd.f32 0.0, %v508
    %v510 = vpop.f32.mrb[0].mxu0
    %511 = vmatprep.mubr.f32.mxu0 0.0
    %v512 = vand.u32 %v281, 4294901760
    %v513 = vsub.f32 %v281, %v512
    %v514 = vand.u32 %v513, 4294901760
    %v515 = vsub.f32 %v513, %v514
    %v516 = vand.u32 %v515, 4294901760
    %517 = vmatmul.mubr.f32.gmra.mrb[0].mxu0 %v516
    %v518 = vpop.f32.mrb[0].mxu0
    %v519 = vadd.f32 0.0, %v518
    %v520 = vpop.f32.mrb[0].mxu0
    %521 = vmatprep.mubr.f32.mxu0 0.0
    %v522 = vand.u32 %v284, 4294901760
    %v523 = vsub.f32 %v284, %v522
    %v524 = vand.u32 %v523, 4294901760
    %v525 = vsub.f32 %v523, %v524
    %v526 = vand.u32 %v525, 4294901760
    %527 = vmatmul.mubr.f32.gmra.mrb[0].mxu0 %v526
    %v528 = vpop.f32.mrb[0].mxu0
    %v529 = vadd.f32 0.0, %v528
    %v530 = vpop.f32.mrb[0].mxu0
    %531 = vmatprep.mubr.f32.mxu0 0.0
    %v532 = vand.u32 %v287, 4294901760
    %v533 = vsub.f32 %v287, %v532
    %v534 = vand.u32 %v533, 4294901760
    %v535 = vsub.f32 %v533, %v534
    %v536 = vand.u32 %v535, 4294901760
    %537 = vmatmul.mubr.f32.gmra.mrb[0].mxu0 %v536
    %v538 = vpop.f32.mrb[0].mxu0
    %v539 = vadd.f32 0.0, %v538
    %v540 = vpop.f32.mrb[0].mxu0
    %541 = vmatprep.mubr.f32.mxu0 0.0
    %v542 = vand.u32 %v290, 4294901760
    %v543 = vsub.f32 %v290, %v542
    %v544 = vand.u32 %v543, 4294901760
    %v545 = vsub.f32 %v543, %v544
    %v546 = vand.u32 %v545, 4294901760
    %547 = vmatmul.mubr.f32.gmra.mrb[0].mxu0 %v546
    %v548 = vpop.f32.mrb[0].mxu0
    %v549 = vadd.f32 0.0, %v548
    %v550 = vpop.f32.mrb[0].mxu0
    %551 = vmatprep.mubr.f32.mxu0 0.0
    %v552 = vand.u32 %v293, 4294901760
    %v553 = vsub.f32 %v293, %v552
    %v554 = vand.u32 %v553, 4294901760
    %v555 = vsub.f32 %v553, %v554
    %v556 = vand.u32 %v555, 4294901760
    %557 = vmatmul.mubr.f32.gmra.mrb[0].mxu0 %v556
    %v558 = vpop.f32.mrb[0].mxu0
    %v559 = vadd.f32 0.0, %v558
    %v560 = vpop.f32.mrb[0].mxu0
    %561 = vmatprep.mubr.f32.mxu0 0.0
    %v562 = vand.u32 %v296, 4294901760
    %v563 = vsub.f32 %v296, %v562
    %v564 = vand.u32 %v563, 4294901760
    %v565 = vsub.f32 %v563, %v564
    %v566 = vand.u32 %v565, 4294901760
    %567 = vmatmul.mubr.f32.gmra.mrb[0].mxu0 %v566
    %v568 = vpop.f32.mrb[0].mxu0
    %v569 = vadd.f32 0.0, %v568
    %v570 = vpop.f32.mrb[0].mxu0
    %571 = vmatprep.mubr.f32.mxu0 0.0
    %v572 = vand.u32 %v299, 4294901760
    %v573 = vsub.f32 %v299, %v572
    %v574 = vand.u32 %v573, 4294901760
    %v575 = vsub.f32 %v573, %v574
    %v576 = vand.u32 %v575, 4294901760
    %577 = vmatmul.mubr.f32.gmra.mrb[0].mxu0 %v576
    %v578 = vpop.f32.mrb[0].mxu0
    %v579 = vadd.f32 0.0, %v578
    %v580 = vpop.f32.mrb[0].mxu0
    %581 = vmatprep.mubr.f32.mxu0 0.0
    %v582 = vand.u32 %v302, 4294901760
    %v583 = vsub.f32 %v302, %v582
    %v584 = vand.u32 %v583, 4294901760
    %v585 = vsub.f32 %v583, %v584
    %v586 = vand.u32 %v585, 4294901760
    %587 = vmatmul.mubr.f32.gmra.mrb[0].mxu0 %v586
    %v588 = vpop.f32.mrb[0].mxu0
    %v589 = vadd.f32 0.0, %v588
    %v590 = vpop.f32.mrb[0].mxu0
    %591 = vmatprep.mubr.f32.mxu0 0.0
    %v592 = vand.u32 %v305, 4294901760
    %v593 = vsub.f32 %v305, %v592
    %v594 = vand.u32 %v593, 4294901760
    %v595 = vsub.f32 %v593, %v594
    %v596 = vand.u32 %v595, 4294901760
    %597 = vmatmul.mubr.f32.gmra.mrb[0].mxu0 %v596
    %v598 = vpop.f32.mrb[0].mxu0
    %v599 = vadd.f32 0.0, %v598
    %v600 = vpop.f32.mrb[0].mxu0
    %601 = vmatprep.mubr.f32.mxu0 0.0
    %v602 = vand.u32 %v308, 4294901760
    %v603 = vsub.f32 %v308, %v602
    %v604 = vand.u32 %v603, 4294901760
    %v605 = vsub.f32 %v603, %v604
    %v606 = vand.u32 %v605, 4294901760
    %607 = vmatmul.mubr.f32.gmra.mrb[0].mxu0 %v606
    %v608 = vpop.f32.mrb[0].mxu0
    %v609 = vadd.f32 0.0, %v608
    %v610 = vpop.f32.mrb[0].mxu0
    %611 = vmatprep.mubr.f32.mxu0 0.0
    %v612 = vand.u32 %v311, 4294901760
    %v613 = vsub.f32 %v311, %v612
    %v614 = vand.u32 %v613, 4294901760
    %v615 = vsub.f32 %v613, %v614
    %v616 = vand.u32 %v615, 4294901760
    %617 = vmatmul.mubr.f32.gmra.mrb[0].mxu0 %v616
    %v618 = vpop.f32.mrb[0].mxu0
    %v619 = vadd.f32 0.0, %v618
    %v620 = vpop.f32.mrb[0].mxu0
    %621 = vmatprep.mubr.f32.mxu0 0.0
    %v622 = vand.u32 %v314, 4294901760
    %v623 = vsub.f32 %v314, %v622
    %v624 = vand.u32 %v623, 4294901760
    %v625 = vsub.f32 %v623, %v624
    %v626 = vand.u32 %v625, 4294901760
    %627 = vmatmul.mubr.f32.gmra.mrb[0].mxu0 %v626
    %v628 = vpop.f32.mrb[0].mxu0
    %v629 = vadd.f32 0.0, %v628
    %v630 = vpop.f32.mrb[0].mxu0
    %631 = vmatprep.mubr.f32.mxu0 0.0
    %v632 = vand.u32 %v317, 4294901760
    %v633 = vsub.f32 %v317, %v632
    %v634 = vand.u32 %v633, 4294901760
    %v635 = vsub.f32 %v633, %v634
    %v636 = vand.u32 %v635, 4294901760
    %637 = vmatmul.mubr.f32.gmra.mrb[0].mxu0 %v636
    %v638 = vpop.f32.mrb[0].mxu0
    %v639 = vadd.f32 0.0, %v638
    %v640 = vpop.f32.mrb[0].mxu0
    %641 = vmatprep.mubr.f32.mxu0 0.0
    %v642 = vand.u32 %v320, 4294901760
    %v643 = vsub.f32 %v320, %v642
    %v644 = vand.u32 %v643, 4294901760
    %v645 = vsub.f32 %v643, %v644
    %v646 = vand.u32 %v645, 4294901760
    %647 = vmatmul.mubr.f32.gmra.mrb[0].mxu0 %v646
    %v648 = vpop.f32.mrb[0].mxu0
    %v649 = vadd.f32 0.0, %v648
    %v650 = vpop.f32.mrb[0].mxu0
    %651 = vmatprep.mubr.f32.mxu0 0.0
    %v652 = vand.u32 %v323, 4294901760
    %v653 = vsub.f32 %v323, %v652
    %v654 = vand.u32 %v653, 4294901760
    %v655 = vsub.f32 %v653, %v654
    %v656 = vand.u32 %v655, 4294901760
    %657 = vmatmul.mubr.f32.gmra.mrb[0].mxu0 %v656
    %v658 = vpop.f32.mrb[0].mxu0
    %v659 = vadd.f32 0.0, %v658
    %v660 = vpop.f32.mrb[0].mxu0
    %661 = vmatprep.mubr.f32.mxu0 0.0
    %v662 = vand.u32 %v326, 4294901760
    %v663 = vsub.f32 %v326, %v662
    %v664 = vand.u32 %v663, 4294901760
    %v665 = vsub.f32 %v663, %v664
    %v666 = vand.u32 %v665, 4294901760
    %667 = vmatmul.mubr.f32.gmra.mrb[0].mxu0 %v666
    %v668 = vpop.f32.mrb[0].mxu0
    %v669 = vadd.f32 0.0, %v668
    %v670 = vpop.f32.mrb[0].mxu0
    %671 = vmatprep.mubr.f32.mxu0 0.0
    %v672 = vand.u32 %v329, 4294901760
    %v673 = vsub.f32 %v329, %v672
    %v674 = vand.u32 %v673, 4294901760
    %v675 = vsub.f32 %v673, %v674
    %v676 = vand.u32 %v675, 4294901760
    %677 = vmatmul.mubr.f32.gmra.mrb[0].mxu0 %v676
    %v678 = vpop.f32.mrb[0].mxu0
    %v679 = vadd.f32 0.0, %v678
    %v680 = vpop.f32.mrb[0].mxu0
    %681 = vmatprep.mubr.f32.mxu0 0.0
    %v682 = vand.u32 %v332, 4294901760
    %v683 = vsub.f32 %v332, %v682
    %v684 = vand.u32 %v683, 4294901760
    %v685 = vsub.f32 %v683, %v684
    %v686 = vand.u32 %v685, 4294901760
    %687 = vmatmul.mubr.f32.gmra.mrb[0].mxu0 %v686
    %v688 = vpop.f32.mrb[0].mxu0
    %v689 = vadd.f32 0.0, %v688
    %v690 = vpop.f32.mrb[0].mxu0
    %691 = vmatprep.mubr.f32.mxu0 0.0
    %v692 = vand.u32 %v335, 4294901760
    %v693 = vsub.f32 %v335, %v692
    %v694 = vand.u32 %v693, 4294901760
    %v695 = vsub.f32 %v693, %v694
    %v696 = vand.u32 %v695, 4294901760
    %697 = vmatmul.mubr.f32.gmra.mrb[0].mxu0 %v696
    %v698 = vpop.f32.mrb[0].mxu0
    %v699 = vadd.f32 0.0, %v698
    %v700 = vpop.f32.mrb[0].mxu0
    %701 = vmatprep.mubr.f32.mxu0 0.0
    %v702 = vand.u32 %v338, 4294901760
    %v703 = vsub.f32 %v338, %v702
    %v704 = vand.u32 %v703, 4294901760
    %v705 = vsub.f32 %v703, %v704
    %v706 = vand.u32 %v705, 4294901760
    %707 = vmatmul.mubr.f32.gmra.mrb[0].mxu0 %v706
    %v708 = vpop.f32.mrb[0].mxu0
    %v709 = vadd.f32 0.0, %v708
    %v710 = vpop.f32.mrb[0].mxu0
    %711 = vmatprep.mubr.f32.mxu0 0.0
    %v712 = vand.u32 %v341, 4294901760
    %v713 = vsub.f32 %v341, %v712
    %v714 = vand.u32 %v713, 4294901760
    %v715 = vsub.f32 %v713, %v714
    %v716 = vand.u32 %v715, 4294901760
    %717 = vmatmul.mubr.f32.gmra.mrb[0].mxu0 %v716
    %v718 = vpop.f32.mrb[0].mxu0
    %v719 = vadd.f32 0.0, %v718
    %v720 = vpop.f32.mrb[0].mxu0
    %721 = vmatprep.mubr.f32.mxu0 0.0
    %v722 = vand.u32 %v344, 4294901760
    %v723 = vsub.f32 %v344, %v722
    %v724 = vand.u32 %v723, 4294901760
    %v725 = vsub.f32 %v723, %v724
    %v726 = vand.u32 %v725, 4294901760
    %727 = vmatmul.mubr.f32.gmra.mrb[0].mxu0 %v726
    %v728 = vpop.f32.mrb[0].mxu0
    %v729 = vadd.f32 0.0, %v728
    %v730 = vpop.f32.mrb[0].mxu0
    %731 = vmatprep.mubr.f32.mxu0 0.0
    %v732 = vand.u32 %v347, 4294901760
    %v733 = vsub.f32 %v347, %v732
    %v734 = vand.u32 %v733, 4294901760
    %v735 = vsub.f32 %v733, %v734
    %v736 = vand.u32 %v735, 4294901760
    %737 = vmatmul.mubr.f32.gmra.mrb[0].mxu0 %v736
    %v738 = vpop.f32.mrb[0].mxu0
    %v739 = vadd.f32 0.0, %v738
    %v740 = vpop.f32.mrb[0].mxu0
    %741 = vdwg.mxu0
    %742 = vmatprep.subr.mxu0 0.0
    %v743 = vand.u32 %v244, 4294901760
    %v744 = vsub.f32 %v244, %v743
    %v745 = vand.u32 %v744, 4294901760
    %v746 = vsub.f32 %v744, %v745
    %v747 = vand.u32 %v746, 4294901760
    %748 = vmatpush1.msra.mxu0 %v747
    %749 = vmatprep.subr.mxu0 0.0
    %v750 = vand.u32 %v245, 4294901760
    %v751 = vsub.f32 %v245, %v750
    %v752 = vand.u32 %v751, 4294901760
    %v753 = vsub.f32 %v751, %v752
    %v754 = vand.u32 %v753, 4294901760
    %755 = vmatpush1.msra.mxu0 %v754
    %756 = vmatprep.subr.mxu0 0.0
    %v757 = vand.u32 %v246, 4294901760
    %v758 = vsub.f32 %v246, %v757
    %v759 = vand.u32 %v758, 4294901760
    %v760 = vsub.f32 %v758, %v759
    %v761 = vand.u32 %v760, 4294901760
    %762 = vmatpush1.msra.mxu0 %v761
    %763 = vmatprep.subr.mxu0 0.0
    %v764 = vand.u32 %v247, 4294901760
    %v765 = vsub.f32 %v247, %v764
    %v766 = vand.u32 %v765, 4294901760
    %v767 = vsub.f32 %v765, %v766
    %v768 = vand.u32 %v767, 4294901760
    %769 = vmatpush1.msra.mxu0 %v768
    %770 = vmatprep.subr.mxu0 0.0
    %v771 = vand.u32 %v248, 4294901760
    %v772 = vsub.f32 %v248, %v771
    %v773 = vand.u32 %v772, 4294901760
    %v774 = vsub.f32 %v772, %v773
    %v775 = vand.u32 %v774, 4294901760
    %776 = vmatpush1.msra.mxu0 %v775
    %777 = vmatprep.subr.mxu0 0.0
    %v778 = vand.u32 %v249, 4294901760
    %v779 = vsub.f32 %v249, %v778
    %v780 = vand.u32 %v779, 4294901760
    %v781 = vsub.f32 %v779, %v780
    %v782 = vand.u32 %v781, 4294901760
    %783 = vmatpush1.msra.mxu0 %v782
    %784 = vmatprep.subr.mxu0 0.0
    %v785 = vand.u32 %v250, 4294901760
    %v786 = vsub.f32 %v250, %v785
    %v787 = vand.u32 %v786, 4294901760
    %v788 = vsub.f32 %v786, %v787
    %v789 = vand.u32 %v788, 4294901760
    %790 = vmatpush1.msra.mxu0 %v789
    %791 = vmatprep.subr.mxu0 0.0
    %v792 = vand.u32 %v251, 4294901760
    %v793 = vsub.f32 %v251, %v792
    %v794 = vand.u32 %v793, 4294901760
    %v795 = vsub.f32 %v793, %v794
    %v796 = vand.u32 %v795, 4294901760
    %797 = vmatpush1.msra.mxu0 %v796
    %798 = vmatprep.subr.mxu0 0.0
    %799 = vmatpush1.msra.mxu0 0.0
    %800 = vmatprep.subr.mxu0 0.0
    %801 = vmatpush1.msra.mxu0 0.0
    %802 = vmatprep.subr.mxu0 0.0
    %803 = vmatpush1.msra.mxu0 0.0
    %804 = vmatprep.subr.mxu0 0.0
    %805 = vmatpush1.msra.mxu0 0.0
    %806 = vmatprep.subr.mxu0 0.0
    %807 = vmatpush1.msra.mxu0 0.0
    %808 = vmatprep.subr.mxu0 0.0
    %809 = vmatpush1.msra.mxu0 0.0
    %810 = vmatprep.subr.mxu0 0.0
    %811 = vmatpush1.msra.mxu0 0.0
    %812 = vmatprep.subr.mxu0 0.0
    %813 = vmatpush1.msra.mxu0 0.0
    %814 = vmatprep.subr.mxu0 0.0
    %815 = vmatpush1.msra.mxu0 0.0
    %816 = vmatprep.subr.mxu0 0.0
    %817 = vmatpush1.msra.mxu0 0.0
    %818 = vmatprep.subr.mxu0 0.0
    %819 = vmatpush1.msra.mxu0 0.0
    %820 = vmatprep.subr.mxu0 0.0
    %821 = vmatpush1.msra.mxu0 0.0
    %822 = vmatprep.subr.mxu0 0.0
    %823 = vmatpush1.msra.mxu0 0.0
    %824 = vmatprep.subr.mxu0 0.0
    %825 = vmatpush1.msra.mxu0 0.0
    %826 = vmatprep.subr.mxu0 0.0
    %827 = vmatpush1.msra.mxu0 0.0
    %828 = vmatprep.subr.mxu0 0.0
    %829 = vmatpush1.msra.mxu0 0.0
    %830 = vmatprep.subr.mxu0 0.0
    %831 = vmatpush1.msra.mxu0 0.0
    %832 = vmatprep.subr.mxu0 0.0
    %833 = vmatpush1.msra.mxu0 0.0
    %834 = vmatprep.subr.mxu0 0.0
    %835 = vmatpush1.msra.mxu0 0.0
    %836 = vmatprep.subr.mxu0 0.0
    %837 = vmatpush1.msra.mxu0 0.0
    %838 = vmatprep.subr.mxu0 0.0
    %839 = vmatpush1.msra.mxu0 0.0
    %840 = vmatprep.subr.mxu0 0.0
    %841 = vmatpush1.msra.mxu0 0.0
    %842 = vmatprep.subr.mxu0 0.0
    %843 = vmatpush1.msra.mxu0 0.0
    %844 = vmatprep.subr.mxu0 0.0
    %845 = vmatpush1.msra.mxu0 0.0
    %846 = vmatprep.mubr.f32.mxu0 0.0
    %v847 = vand.u32 %v254, 4294901760
    %848 = vmatmul.mubr.f32.gmra.mrb[0].mxu0 %v847
    %v849 = vpop.f32.mrb[0].mxu0
    %v850 = vadd.f32 %v429, %v849
    %v851 = vpop.f32.mrb[0].mxu0
    %852 = vmatprep.mubr.f32.mxu0 0.0
    %v853 = vand.u32 %v257, 4294901760
    %854 = vmatmul.mubr.f32.gmra.mrb[0].mxu0 %v853
    %v855 = vpop.f32.mrb[0].mxu0
    %v856 = vadd.f32 %v439, %v855
    %v857 = vpop.f32.mrb[0].mxu0
    %858 = vmatprep.mubr.f32.mxu0 0.0
    %v859 = vand.u32 %v260, 4294901760
    %860 = vmatmul.mubr.f32.gmra.mrb[0].mxu0 %v859
    %v861 = vpop.f32.mrb[0].mxu0
    %v862 = vadd.f32 %v449, %v861
    %v863 = vpop.f32.mrb[0].mxu0
    %864 = vmatprep.mubr.f32.mxu0 0.0
    %v865 = vand.u32 %v263, 4294901760
    %866 = vmatmul.mubr.f32.gmra.mrb[0].mxu0 %v865
    %v867 = vpop.f32.mrb[0].mxu0
    %v868 = vadd.f32 %v459, %v867
    %v869 = vpop.f32.mrb[0].mxu0
    %870 = vmatprep.mubr.f32.mxu0 0.0
    %v871 = vand.u32 %v266, 4294901760
    %872 = vmatmul.mubr.f32.gmra.mrb[0].mxu0 %v871
    %v873 = vpop.f32.mrb[0].mxu0
    %v874 = vadd.f32 %v469, %v873
    %v875 = vpop.f32.mrb[0].mxu0
    %876 = vmatprep.mubr.f32.mxu0 0.0
    %v877 = vand.u32 %v269, 4294901760
    %878 = vmatmul.mubr.f32.gmra.mrb[0].mxu0 %v877
    %v879 = vpop.f32.mrb[0].mxu0
    %v880 = vadd.f32 %v479, %v879
    %v881 = vpop.f32.mrb[0].mxu0
    %882 = vmatprep.mubr.f32.mxu0 0.0
    %v883 = vand.u32 %v272, 4294901760
    %884 = vmatmul.mubr.f32.gmra.mrb[0].mxu0 %v883
    %v885 = vpop.f32.mrb[0].mxu0
    %v886 = vadd.f32 %v489, %v885
    %v887 = vpop.f32.mrb[0].mxu0
    %888 = vmatprep.mubr.f32.mxu0 0.0
    %v889 = vand.u32 %v275, 4294901760
    %890 = vmatmul.mubr.f32.gmra.mrb[0].mxu0 %v889
    %v891 = vpop.f32.mrb[0].mxu0
    %v892 = vadd.f32 %v499, %v891
    %v893 = vpop.f32.mrb[0].mxu0
    %894 = vmatprep.mubr.f32.mxu0 0.0
    %v895 = vand.u32 %v278, 4294901760
    %896 = vmatmul.mubr.f32.gmra.mrb[0].mxu0 %v895
    %v897 = vpop.f32.mrb[0].mxu0
    %v898 = vadd.f32 %v509, %v897
    %v899 = vpop.f32.mrb[0].mxu0
    %900 = vmatprep.mubr.f32.mxu0 0.0
    %v901 = vand.u32 %v281, 4294901760
    %902 = vmatmul.mubr.f32.gmra.mrb[0].mxu0 %v901
    %v903 = vpop.f32.mrb[0].mxu0
    %v904 = vadd.f32 %v519, %v903
    %v905 = vpop.f32.mrb[0].mxu0
    %906 = vmatprep.mubr.f32.mxu0 0.0
    %v907 = vand.u32 %v284, 4294901760
    %908 = vmatmul.mubr.f32.gmra.mrb[0].mxu0 %v907
    %v909 = vpop.f32.mrb[0].mxu0
    %v910 = vadd.f32 %v529, %v909
    %v911 = vpop.f32.mrb[0].mxu0
    %912 = vmatprep.mubr.f32.mxu0 0.0
    %v913 = vand.u32 %v287, 4294901760
    %914 = vmatmul.mubr.f32.gmra.mrb[0].mxu0 %v913
    %v915 = vpop.f32.mrb[0].mxu0
    %v916 = vadd.f32 %v539, %v915
    %v917 = vpop.f32.mrb[0].mxu0
    %918 = vmatprep.mubr.f32.mxu0 0.0
    %v919 = vand.u32 %v290, 4294901760
    %920 = vmatmul.mubr.f32.gmra.mrb[0].mxu0 %v919
    %v921 = vpop.f32.mrb[0].mxu0
    %v922 = vadd.f32 %v549, %v921
    %v923 = vpop.f32.mrb[0].mxu0
    %924 = vmatprep.mubr.f32.mxu0 0.0
    %v925 = vand.u32 %v293, 4294901760
    %926 = vmatmul.mubr.f32.gmra.mrb[0].mxu0 %v925
    %v927 = vpop.f32.mrb[0].mxu0
    %v928 = vadd.f32 %v559, %v927
    %v929 = vpop.f32.mrb[0].mxu0
    %930 = vmatprep.mubr.f32.mxu0 0.0
    %v931 = vand.u32 %v296, 4294901760
    %932 = vmatmul.mubr.f32.gmra.mrb[0].mxu0 %v931
    %v933 = vpop.f32.mrb[0].mxu0
    %v934 = vadd.f32 %v569, %v933
    %v935 = vpop.f32.mrb[0].mxu0
    %936 = vmatprep.mubr.f32.mxu0 0.0
    %v937 = vand.u32 %v299, 4294901760
    %938 = vmatmul.mubr.f32.gmra.mrb[0].mxu0 %v937
    %v939 = vpop.f32.mrb[0].mxu0
    %v940 = vadd.f32 %v579, %v939
    %v941 = vpop.f32.mrb[0].mxu0
    %942 = vmatprep.mubr.f32.mxu0 0.0
    %v943 = vand.u32 %v302, 4294901760
    %944 = vmatmul.mubr.f32.gmra.mrb[0].mxu0 %v943
    %v945 = vpop.f32.mrb[0].mxu0
    %v946 = vadd.f32 %v589, %v945
    %v947 = vpop.f32.mrb[0].mxu0
    %948 = vmatprep.mubr.f32.mxu0 0.0
    %v949 = vand.u32 %v305, 4294901760
    %950 = vmatmul.mubr.f32.gmra.mrb[0].mxu0 %v949
    %v951 = vpop.f32.mrb[0].mxu0
    %v952 = vadd.f32 %v599, %v951
    %v953 = vpop.f32.mrb[0].mxu0
    %954 = vmatprep.mubr.f32.mxu0 0.0
    %v955 = vand.u32 %v308, 4294901760
    %956 = vmatmul.mubr.f32.gmra.mrb[0].mxu0 %v955
    %v957 = vpop.f32.mrb[0].mxu0
    %v958 = vadd.f32 %v609, %v957
    %v959 = vpop.f32.mrb[0].mxu0
    %960 = vmatprep.mubr.f32.mxu0 0.0
    %v961 = vand.u32 %v311, 4294901760
    %962 = vmatmul.mubr.f32.gmra.mrb[0].mxu0 %v961
    %v963 = vpop.f32.mrb[0].mxu0
    %v964 = vadd.f32 %v619, %v963
    %v965 = vpop.f32.mrb[0].mxu0
    %966 = vmatprep.mubr.f32.mxu0 0.0
    %v967 = vand.u32 %v314, 4294901760
    %968 = vmatmul.mubr.f32.gmra.mrb[0].mxu0 %v967
    %v969 = vpop.f32.mrb[0].mxu0
    %v970 = vadd.f32 %v629, %v969
    %v971 = vpop.f32.mrb[0].mxu0
    %972 = vmatprep.mubr.f32.mxu0 0.0
    %v973 = vand.u32 %v317, 4294901760
    %974 = vmatmul.mubr.f32.gmra.mrb[0].mxu0 %v973
    %v975 = vpop.f32.mrb[0].mxu0
    %v976 = vadd.f32 %v639, %v975
    %v977 = vpop.f32.mrb[0].mxu0
    %978 = vmatprep.mubr.f32.mxu0 0.0
    %v979 = vand.u32 %v320, 4294901760
    %980 = vmatmul.mubr.f32.gmra.mrb[0].mxu0 %v979
    %v981 = vpop.f32.mrb[0].mxu0
    %v982 = vadd.f32 %v649, %v981
    %v983 = vpop.f32.mrb[0].mxu0
    %984 = vmatprep.mubr.f32.mxu0 0.0
    %v985 = vand.u32 %v323, 4294901760
    %986 = vmatmul.mubr.f32.gmra.mrb[0].mxu0 %v985
    %v987 = vpop.f32.mrb[0].mxu0
    %v988 = vadd.f32 %v659, %v987
    %v989 = vpop.f32.mrb[0].mxu0
    %990 = vmatprep.mubr.f32.mxu0 0.0
    %v991 = vand.u32 %v326, 4294901760
    %992 = vmatmul.mubr.f32.gmra.mrb[0].mxu0 %v991
    %v993 = vpop.f32.mrb[0].mxu0
    %v994 = vadd.f32 %v669, %v993
    %v995 = vpop.f32.mrb[0].mxu0
    %996 = vmatprep.mubr.f32.mxu0 0.0
    %v997 = vand.u32 %v329, 4294901760
    %998 = vmatmul.mubr.f32.gmra.mrb[0].mxu0 %v997
    %v999 = vpop.f32.mrb[0].mxu0
    %v1000 = vadd.f32 %v679, %v999
    %v1001 = vpop.f32.mrb[0].mxu0
    %1002 = vmatprep.mubr.f32.mxu0 0.0
    %v1003 = vand.u32 %v332, 4294901760
    %1004 = vmatmul.mubr.f32.gmra.mrb[0].mxu0 %v1003
    %v1005 = vpop.f32.mrb[0].mxu0
    %v1006 = vadd.f32 %v689, %v1005
    %v1007 = vpop.f32.mrb[0].mxu0
    %1008 = vmatprep.mubr.f32.mxu0 0.0
    %v1009 = vand.u32 %v335, 4294901760
    %1010 = vmatmul.mubr.f32.gmra.mrb[0].mxu0 %v1009
    %v1011 = vpop.f32.mrb[0].mxu0
    %v1012 = vadd.f32 %v699, %v1011
    %v1013 = vpop.f32.mrb[0].mxu0
    %1014 = vmatprep.mubr.f32.mxu0 0.0
    %v1015 = vand.u32 %v338, 4294901760
    %1016 = vmatmul.mubr.f32.gmra.mrb[0].mxu0 %v1015
    %v1017 = vpop.f32.mrb[0].mxu0
    %v1018 = vadd.f32 %v709, %v1017
    %v1019 = vpop.f32.mrb[0].mxu0
    %1020 = vmatprep.mubr.f32.mxu0 0.0
    %v1021 = vand.u32 %v341, 4294901760
    %1022 = vmatmul.mubr.f32.gmra.mrb[0].mxu0 %v1021
    %v1023 = vpop.f32.mrb[0].mxu0
    %v1024 = vadd.f32 %v719, %v1023
    %v1025 = vpop.f32.mrb[0].mxu0
    %1026 = vmatprep.mubr.f32.mxu0 0.0
    %v1027 = vand.u32 %v344, 4294901760
    %1028 = vmatmul.mubr.f32.gmra.mrb[0].mxu0 %v1027
    %v1029 = vpop.f32.mrb[0].mxu0
    %v1030 = vadd.f32 %v729, %v1029
    %v1031 = vpop.f32.mrb[0].mxu0
    %1032 = vmatprep.mubr.f32.mxu0 0.0
    %v1033 = vand.u32 %v347, 4294901760
    %1034 = vmatmul.mubr.f32.gmra.mrb[0].mxu0 %v1033
    %v1035 = vpop.f32.mrb[0].mxu0
    %v1036 = vadd.f32 %v739, %v1035
    %v1037 = vpop.f32.mrb[0].mxu0
    %1038 = vdwg.mxu0
    %1039 = vmatprep.subr.mxu0 0.0
    %v1040 = vand.u32 %v244, 4294901760
    %v1041 = vsub.f32 %v244, %v1040
    %1042 = vmatpush1.msra.mxu0 %v1041
    %1043 = vmatprep.subr.mxu0 0.0
    %v1044 = vand.u32 %v245, 4294901760
    %v1045 = vsub.f32 %v245, %v1044
    %1046 = vmatpush1.msra.mxu0 %v1045
    %1047 = vmatprep.subr.mxu0 0.0
    %v1048 = vand.u32 %v246, 4294901760
    %v1049 = vsub.f32 %v246, %v1048
    %1050 = vmatpush1.msra.mxu0 %v1049
    %1051 = vmatprep.subr.mxu0 0.0
    %v1052 = vand.u32 %v247, 4294901760
    %v1053 = vsub.f32 %v247, %v1052
    %1054 = vmatpush1.msra.mxu0 %v1053
    %1055 = vmatprep.subr.mxu0 0.0
    %v1056 = vand.u32 %v248, 4294901760
    %v1057 = vsub.f32 %v248, %v1056
    %1058 = vmatpush1.msra.mxu0 %v1057
    %1059 = vmatprep.subr.mxu0 0.0
    %v1060 = vand.u32 %v249, 4294901760
    %v1061 = vsub.f32 %v249, %v1060
    %1062 = vmatpush1.msra.mxu0 %v1061
    %1063 = vmatprep.subr.mxu0 0.0
    %v1064 = vand.u32 %v250, 4294901760
    %v1065 = vsub.f32 %v250, %v1064
    %1066 = vmatpush1.msra.mxu0 %v1065
    %1067 = vmatprep.subr.mxu0 0.0
    %v1068 = vand.u32 %v251, 4294901760
    %v1069 = vsub.f32 %v251, %v1068
    %1070 = vmatpush1.msra.mxu0 %v1069
    %1071 = vmatprep.subr.mxu0 0.0
    %1072 = vmatpush1.msra.mxu0 0.0
    %1073 = vmatprep.subr.mxu0 0.0
    %1074 = vmatpush1.msra.mxu0 0.0
    %1075 = vmatprep.subr.mxu0 0.0
    %1076 = vmatpush1.msra.mxu0 0.0
    %1077 = vmatprep.subr.mxu0 0.0
    %1078 = vmatpush1.msra.mxu0 0.0
    %1079 = vmatprep.subr.mxu0 0.0
    %1080 = vmatpush1.msra.mxu0 0.0
    %1081 = vmatprep.subr.mxu0 0.0
    %1082 = vmatpush1.msra.mxu0 0.0
    %1083 = vmatprep.subr.mxu0 0.0
    %1084 = vmatpush1.msra.mxu0 0.0
    %1085 = vmatprep.subr.mxu0 0.0
    %1086 = vmatpush1.msra.mxu0 0.0
    %1087 = vmatprep.subr.mxu0 0.0
    %1088 = vmatpush1.msra.mxu0 0.0
    %1089 = vmatprep.subr.mxu0 0.0
    %1090 = vmatpush1.msra.mxu0 0.0
    %1091 = vmatprep.subr.mxu0 0.0
    %1092 = vmatpush1.msra.mxu0 0.0
    %1093 = vmatprep.subr.mxu0 0.0
    %1094 = vmatpush1.msra.mxu0 0.0
    %1095 = vmatprep.subr.mxu0 0.0
    %1096 = vmatpush1.msra.mxu0 0.0
    %1097 = vmatprep.subr.mxu0 0.0
    %1098 = vmatpush1.msra.mxu0 0.0
    %1099 = vmatprep.subr.mxu0 0.0
    %1100 = vmatpush1.msra.mxu0 0.0
    %1101 = vmatprep.subr.mxu0 0.0
    %1102 = vmatpush1.msra.mxu0 0.0
    %1103 = vmatprep.subr.mxu0 0.0
    %1104 = vmatpush1.msra.mxu0 0.0
    %1105 = vmatprep.subr.mxu0 0.0
    %1106 = vmatpush1.msra.mxu0 0.0
    %1107 = vmatprep.subr.mxu0 0.0
    %1108 = vmatpush1.msra.mxu0 0.0
    %1109 = vmatprep.subr.mxu0 0.0
    %1110 = vmatpush1.msra.mxu0 0.0
    %1111 = vmatprep.subr.mxu0 0.0
    %1112 = vmatpush1.msra.mxu0 0.0
    %1113 = vmatprep.subr.mxu0 0.0
    %1114 = vmatpush1.msra.mxu0 0.0
    %1115 = vmatprep.subr.mxu0 0.0
    %1116 = vmatpush1.msra.mxu0 0.0
    %1117 = vmatprep.subr.mxu0 0.0
    %1118 = vmatpush1.msra.mxu0 0.0
    %1119 = vmatprep.mubr.f32.mxu0 0.0
    %v1120 = vand.u32 %v254, 4294901760
    %v1121 = vsub.f32 %v254, %v1120
    %1122 = vmatmul.mubr.f32.gmra.mrb[0].mxu0 %v1121
    %v1123 = vpop.f32.mrb[0].mxu0
    %v1124 = vadd.f32 %v850, %v1123
    %v1125 = vpop.f32.mrb[0].mxu0
    %1126 = vmatprep.mubr.f32.mxu0 0.0
    %v1127 = vand.u32 %v257, 4294901760
    %v1128 = vsub.f32 %v257, %v1127
    %1129 = vmatmul.mubr.f32.gmra.mrb[0].mxu0 %v1128
    %v1130 = vpop.f32.mrb[0].mxu0
    %v1131 = vadd.f32 %v856, %v1130
    %v1132 = vpop.f32.mrb[0].mxu0
    %1133 = vmatprep.mubr.f32.mxu0 0.0
    %v1134 = vand.u32 %v260, 4294901760
    %v1135 = vsub.f32 %v260, %v1134
    %1136 = vmatmul.mubr.f32.gmra.mrb[0].mxu0 %v1135
    %v1137 = vpop.f32.mrb[0].mxu0
    %v1138 = vadd.f32 %v862, %v1137
    %v1139 = vpop.f32.mrb[0].mxu0
    %1140 = vmatprep.mubr.f32.mxu0 0.0
    %v1141 = vand.u32 %v263, 4294901760
    %v1142 = vsub.f32 %v263, %v1141
    %1143 = vmatmul.mubr.f32.gmra.mrb[0].mxu0 %v1142
    %v1144 = vpop.f32.mrb[0].mxu0
    %v1145 = vadd.f32 %v868, %v1144
    %v1146 = vpop.f32.mrb[0].mxu0
    %1147 = vmatprep.mubr.f32.mxu0 0.0
    %v1148 = vand.u32 %v266, 4294901760
    %v1149 = vsub.f32 %v266, %v1148
    %1150 = vmatmul.mubr.f32.gmra.mrb[0].mxu0 %v1149
    %v1151 = vpop.f32.mrb[0].mxu0
    %v1152 = vadd.f32 %v874, %v1151
    %v1153 = vpop.f32.mrb[0].mxu0
    %1154 = vmatprep.mubr.f32.mxu0 0.0
    %v1155 = vand.u32 %v269, 4294901760
    %v1156 = vsub.f32 %v269, %v1155
    %1157 = vmatmul.mubr.f32.gmra.mrb[0].mxu0 %v1156
    %v1158 = vpop.f32.mrb[0].mxu0
    %v1159 = vadd.f32 %v880, %v1158
    %v1160 = vpop.f32.mrb[0].mxu0
    %1161 = vmatprep.mubr.f32.mxu0 0.0
    %v1162 = vand.u32 %v272, 4294901760
    %v1163 = vsub.f32 %v272, %v1162
    %1164 = vmatmul.mubr.f32.gmra.mrb[0].mxu0 %v1163
    %v1165 = vpop.f32.mrb[0].mxu0
    %v1166 = vadd.f32 %v886, %v1165
    %v1167 = vpop.f32.mrb[0].mxu0
    %1168 = vmatprep.mubr.f32.mxu0 0.0
    %v1169 = vand.u32 %v275, 4294901760
    %v1170 = vsub.f32 %v275, %v1169
    %1171 = vmatmul.mubr.f32.gmra.mrb[0].mxu0 %v1170
    %v1172 = vpop.f32.mrb[0].mxu0
    %v1173 = vadd.f32 %v892, %v1172
    %v1174 = vpop.f32.mrb[0].mxu0
    %1175 = vmatprep.mubr.f32.mxu0 0.0
    %v1176 = vand.u32 %v278, 4294901760
    %v1177 = vsub.f32 %v278, %v1176
    %1178 = vmatmul.mubr.f32.gmra.mrb[0].mxu0 %v1177
    %v1179 = vpop.f32.mrb[0].mxu0
    %v1180 = vadd.f32 %v898, %v1179
    %v1181 = vpop.f32.mrb[0].mxu0
    %1182 = vmatprep.mubr.f32.mxu0 0.0
    %v1183 = vand.u32 %v281, 4294901760
    %v1184 = vsub.f32 %v281, %v1183
    %1185 = vmatmul.mubr.f32.gmra.mrb[0].mxu0 %v1184
    %v1186 = vpop.f32.mrb[0].mxu0
    %v1187 = vadd.f32 %v904, %v1186
    %v1188 = vpop.f32.mrb[0].mxu0
    %1189 = vmatprep.mubr.f32.mxu0 0.0
    %v1190 = vand.u32 %v284, 4294901760
    %v1191 = vsub.f32 %v284, %v1190
    %1192 = vmatmul.mubr.f32.gmra.mrb[0].mxu0 %v1191
    %v1193 = vpop.f32.mrb[0].mxu0
    %v1194 = vadd.f32 %v910, %v1193
    %v1195 = vpop.f32.mrb[0].mxu0
    %1196 = vmatprep.mubr.f32.mxu0 0.0
    %v1197 = vand.u32 %v287, 4294901760
    %v1198 = vsub.f32 %v287, %v1197
    %1199 = vmatmul.mubr.f32.gmra.mrb[0].mxu0 %v1198
    %v1200 = vpop.f32.mrb[0].mxu0
    %v1201 = vadd.f32 %v916, %v1200
    %v1202 = vpop.f32.mrb[0].mxu0
    %1203 = vmatprep.mubr.f32.mxu0 0.0
    %v1204 = vand.u32 %v290, 4294901760
    %v1205 = vsub.f32 %v290, %v1204
    %1206 = vmatmul.mubr.f32.gmra.mrb[0].mxu0 %v1205
    %v1207 = vpop.f32.mrb[0].mxu0
    %v1208 = vadd.f32 %v922, %v1207
    %v1209 = vpop.f32.mrb[0].mxu0
    %1210 = vmatprep.mubr.f32.mxu0 0.0
    %v1211 = vand.u32 %v293, 4294901760
    %v1212 = vsub.f32 %v293, %v1211
    %1213 = vmatmul.mubr.f32.gmra.mrb[0].mxu0 %v1212
    %v1214 = vpop.f32.mrb[0].mxu0
    %v1215 = vadd.f32 %v928, %v1214
    %v1216 = vpop.f32.mrb[0].mxu0
    %1217 = vmatprep.mubr.f32.mxu0 0.0
    %v1218 = vand.u32 %v296, 4294901760
    %v1219 = vsub.f32 %v296, %v1218
    %1220 = vmatmul.mubr.f32.gmra.mrb[0].mxu0 %v1219
    %v1221 = vpop.f32.mrb[0].mxu0
    %v1222 = vadd.f32 %v934, %v1221
    %v1223 = vpop.f32.mrb[0].mxu0
    %1224 = vmatprep.mubr.f32.mxu0 0.0
    %v1225 = vand.u32 %v299, 4294901760
    %v1226 = vsub.f32 %v299, %v1225
    %1227 = vmatmul.mubr.f32.gmra.mrb[0].mxu0 %v1226
    %v1228 = vpop.f32.mrb[0].mxu0
    %v1229 = vadd.f32 %v940, %v1228
    %v1230 = vpop.f32.mrb[0].mxu0
    %1231 = vmatprep.mubr.f32.mxu0 0.0
    %v1232 = vand.u32 %v302, 4294901760
    %v1233 = vsub.f32 %v302, %v1232
    %1234 = vmatmul.mubr.f32.gmra.mrb[0].mxu0 %v1233
    %v1235 = vpop.f32.mrb[0].mxu0
    %v1236 = vadd.f32 %v946, %v1235
    %v1237 = vpop.f32.mrb[0].mxu0
    %1238 = vmatprep.mubr.f32.mxu0 0.0
    %v1239 = vand.u32 %v305, 4294901760
    %v1240 = vsub.f32 %v305, %v1239
    %1241 = vmatmul.mubr.f32.gmra.mrb[0].mxu0 %v1240
    %v1242 = vpop.f32.mrb[0].mxu0
    %v1243 = vadd.f32 %v952, %v1242
    %v1244 = vpop.f32.mrb[0].mxu0
    %1245 = vmatprep.mubr.f32.mxu0 0.0
    %v1246 = vand.u32 %v308, 4294901760
    %v1247 = vsub.f32 %v308, %v1246
    %1248 = vmatmul.mubr.f32.gmra.mrb[0].mxu0 %v1247
    %v1249 = vpop.f32.mrb[0].mxu0
    %v1250 = vadd.f32 %v958, %v1249
    %v1251 = vpop.f32.mrb[0].mxu0
    %1252 = vmatprep.mubr.f32.mxu0 0.0
    %v1253 = vand.u32 %v311, 4294901760
    %v1254 = vsub.f32 %v311, %v1253
    %1255 = vmatmul.mubr.f32.gmra.mrb[0].mxu0 %v1254
    %v1256 = vpop.f32.mrb[0].mxu0
    %v1257 = vadd.f32 %v964, %v1256
    %v1258 = vpop.f32.mrb[0].mxu0
    %1259 = vmatprep.mubr.f32.mxu0 0.0
    %v1260 = vand.u32 %v314, 4294901760
    %v1261 = vsub.f32 %v314, %v1260
    %1262 = vmatmul.mubr.f32.gmra.mrb[0].mxu0 %v1261
    %v1263 = vpop.f32.mrb[0].mxu0
    %v1264 = vadd.f32 %v970, %v1263
    %v1265 = vpop.f32.mrb[0].mxu0
    %1266 = vmatprep.mubr.f32.mxu0 0.0
    %v1267 = vand.u32 %v317, 4294901760
    %v1268 = vsub.f32 %v317, %v1267
    %1269 = vmatmul.mubr.f32.gmra.mrb[0].mxu0 %v1268
    %v1270 = vpop.f32.mrb[0].mxu0
    %v1271 = vadd.f32 %v976, %v1270
    %v1272 = vpop.f32.mrb[0].mxu0
    %1273 = vmatprep.mubr.f32.mxu0 0.0
    %v1274 = vand.u32 %v320, 4294901760
    %v1275 = vsub.f32 %v320, %v1274
    %1276 = vmatmul.mubr.f32.gmra.mrb[0].mxu0 %v1275
    %v1277 = vpop.f32.mrb[0].mxu0
    %v1278 = vadd.f32 %v982, %v1277
    %v1279 = vpop.f32.mrb[0].mxu0
    %1280 = vmatprep.mubr.f32.mxu0 0.0
    %v1281 = vand.u32 %v323, 4294901760
    %v1282 = vsub.f32 %v323, %v1281
    %1283 = vmatmul.mubr.f32.gmra.mrb[0].mxu0 %v1282
    %v1284 = vpop.f32.mrb[0].mxu0
    %v1285 = vadd.f32 %v988, %v1284
    %v1286 = vpop.f32.mrb[0].mxu0
    %1287 = vmatprep.mubr.f32.mxu0 0.0
    %v1288 = vand.u32 %v326, 4294901760
    %v1289 = vsub.f32 %v326, %v1288
    %1290 = vmatmul.mubr.f32.gmra.mrb[0].mxu0 %v1289
    %v1291 = vpop.f32.mrb[0].mxu0
    %v1292 = vadd.f32 %v994, %v1291
    %v1293 = vpop.f32.mrb[0].mxu0
    %1294 = vmatprep.mubr.f32.mxu0 0.0
    %v1295 = vand.u32 %v329, 4294901760
    %v1296 = vsub.f32 %v329, %v1295
    %1297 = vmatmul.mubr.f32.gmra.mrb[0].mxu0 %v1296
    %v1298 = vpop.f32.mrb[0].mxu0
    %v1299 = vadd.f32 %v1000, %v1298
    %v1300 = vpop.f32.mrb[0].mxu0
    %1301 = vmatprep.mubr.f32.mxu0 0.0
    %v1302 = vand.u32 %v332, 4294901760
    %v1303 = vsub.f32 %v332, %v1302
    %1304 = vmatmul.mubr.f32.gmra.mrb[0].mxu0 %v1303
    %v1305 = vpop.f32.mrb[0].mxu0
    %v1306 = vadd.f32 %v1006, %v1305
    %v1307 = vpop.f32.mrb[0].mxu0
    %1308 = vmatprep.mubr.f32.mxu0 0.0
    %v1309 = vand.u32 %v335, 4294901760
    %v1310 = vsub.f32 %v335, %v1309
    %1311 = vmatmul.mubr.f32.gmra.mrb[0].mxu0 %v1310
    %v1312 = vpop.f32.mrb[0].mxu0
    %v1313 = vadd.f32 %v1012, %v1312
    %v1314 = vpop.f32.mrb[0].mxu0
    %1315 = vmatprep.mubr.f32.mxu0 0.0
    %v1316 = vand.u32 %v338, 4294901760
    %v1317 = vsub.f32 %v338, %v1316
    %1318 = vmatmul.mubr.f32.gmra.mrb[0].mxu0 %v1317
    %v1319 = vpop.f32.mrb[0].mxu0
    %v1320 = vadd.f32 %v1018, %v1319
    %v1321 = vpop.f32.mrb[0].mxu0
    %1322 = vmatprep.mubr.f32.mxu0 0.0
    %v1323 = vand.u32 %v341, 4294901760
    %v1324 = vsub.f32 %v341, %v1323
    %1325 = vmatmul.mubr.f32.gmra.mrb[0].mxu0 %v1324
    %v1326 = vpop.f32.mrb[0].mxu0
    %v1327 = vadd.f32 %v1024, %v1326
    %v1328 = vpop.f32.mrb[0].mxu0
    %1329 = vmatprep.mubr.f32.mxu0 0.0
    %v1330 = vand.u32 %v344, 4294901760
    %v1331 = vsub.f32 %v344, %v1330
    %1332 = vmatmul.mubr.f32.gmra.mrb[0].mxu0 %v1331
    %v1333 = vpop.f32.mrb[0].mxu0
    %v1334 = vadd.f32 %v1030, %v1333
    %v1335 = vpop.f32.mrb[0].mxu0
    %1336 = vmatprep.mubr.f32.mxu0 0.0
    %v1337 = vand.u32 %v347, 4294901760
    %v1338 = vsub.f32 %v347, %v1337
    %1339 = vmatmul.mubr.f32.gmra.mrb[0].mxu0 %v1338
    %v1340 = vpop.f32.mrb[0].mxu0
    %v1341 = vadd.f32 %v1036, %v1340
    %v1342 = vpop.f32.mrb[0].mxu0
    %1343 = vdwg.mxu0
    %1344 = vmatprep.subr.mxu0 0.0
    %v1345 = vand.u32 %v244, 4294901760
    %1346 = vmatpush1.msra.mxu0 %v1345
    %1347 = vmatprep.subr.mxu0 0.0
    %v1348 = vand.u32 %v245, 4294901760
    %1349 = vmatpush1.msra.mxu0 %v1348
    %1350 = vmatprep.subr.mxu0 0.0
    %v1351 = vand.u32 %v246, 4294901760
    %1352 = vmatpush1.msra.mxu0 %v1351
    %1353 = vmatprep.subr.mxu0 0.0
    %v1354 = vand.u32 %v247, 4294901760
    %1355 = vmatpush1.msra.mxu0 %v1354
    %1356 = vmatprep.subr.mxu0 0.0
    %v1357 = vand.u32 %v248, 4294901760
    %1358 = vmatpush1.msra.mxu0 %v1357
    %1359 = vmatprep.subr.mxu0 0.0
    %v1360 = vand.u32 %v249, 4294901760
    %1361 = vmatpush1.msra.mxu0 %v1360
    %1362 = vmatprep.subr.mxu0 0.0
    %v1363 = vand.u32 %v250, 4294901760
    %1364 = vmatpush1.msra.mxu0 %v1363
    %1365 = vmatprep.subr.mxu0 0.0
    %v1366 = vand.u32 %v251, 4294901760
    %1367 = vmatpush1.msra.mxu0 %v1366
    %1368 = vmatprep.subr.mxu0 0.0
    %1369 = vmatpush1.msra.mxu0 0.0
    %1370 = vmatprep.subr.mxu0 0.0
    %1371 = vmatpush1.msra.mxu0 0.0
    %1372 = vmatprep.subr.mxu0 0.0
    %1373 = vmatpush1.msra.mxu0 0.0
    %1374 = vmatprep.subr.mxu0 0.0
    %1375 = vmatpush1.msra.mxu0 0.0
    %1376 = vmatprep.subr.mxu0 0.0
    %1377 = vmatpush1.msra.mxu0 0.0
    %1378 = vmatprep.subr.mxu0 0.0
    %1379 = vmatpush1.msra.mxu0 0.0
    %1380 = vmatprep.subr.mxu0 0.0
    %1381 = vmatpush1.msra.mxu0 0.0
    %1382 = vmatprep.subr.mxu0 0.0
    %1383 = vmatpush1.msra.mxu0 0.0
    %1384 = vmatprep.subr.mxu0 0.0
    %1385 = vmatpush1.msra.mxu0 0.0
    %1386 = vmatprep.subr.mxu0 0.0
    %1387 = vmatpush1.msra.mxu0 0.0
    %1388 = vmatprep.subr.mxu0 0.0
    %1389 = vmatpush1.msra.mxu0 0.0
    %1390 = vmatprep.subr.mxu0 0.0
    %1391 = vmatpush1.msra.mxu0 0.0
    %1392 = vmatprep.subr.mxu0 0.0
    %1393 = vmatpush1.msra.mxu0 0.0
    %1394 = vmatprep.subr.mxu0 0.0
    %1395 = vmatpush1.msra.mxu0 0.0
    %1396 = vmatprep.subr.mxu0 0.0
    %1397 = vmatpush1.msra.mxu0 0.0
    %1398 = vmatprep.subr.mxu0 0.0
    %1399 = vmatpush1.msra.mxu0 0.0
    %1400 = vmatprep.subr.mxu0 0.0
    %1401 = vmatpush1.msra.mxu0 0.0
    %1402 = vmatprep.subr.mxu0 0.0
    %1403 = vmatpush1.msra.mxu0 0.0
    %1404 = vmatprep.subr.mxu0 0.0
    %1405 = vmatpush1.msra.mxu0 0.0
    %1406 = vmatprep.subr.mxu0 0.0
    %1407 = vmatpush1.msra.mxu0 0.0
    %1408 = vmatprep.subr.mxu0 0.0
    %1409 = vmatpush1.msra.mxu0 0.0
    %1410 = vmatprep.subr.mxu0 0.0
    %1411 = vmatpush1.msra.mxu0 0.0
    %1412 = vmatprep.subr.mxu0 0.0
    %1413 = vmatpush1.msra.mxu0 0.0
    %1414 = vmatprep.subr.mxu0 0.0
    %1415 = vmatpush1.msra.mxu0 0.0
    %1416 = vmatprep.mubr.f32.mxu0 0.0
    %v1417 = vand.u32 %v254, 4294901760
    %v1418 = vsub.f32 %v254, %v1417
    %v1419 = vand.u32 %v1418, 4294901760
    %1420 = vmatmul.mubr.f32.gmra.mrb[0].mxu0 %v1419
    %v1421 = vpop.f32.mrb[0].mxu0
    %v1422 = vadd.f32 %v1124, %v1421
    %v1423 = vpop.f32.mrb[0].mxu0
    %1424 = vmatprep.mubr.f32.mxu0 0.0
    %v1425 = vand.u32 %v257, 4294901760
    %v1426 = vsub.f32 %v257, %v1425
    %v1427 = vand.u32 %v1426, 4294901760
    %1428 = vmatmul.mubr.f32.gmra.mrb[0].mxu0 %v1427
    %v1429 = vpop.f32.mrb[0].mxu0
    %v1430 = vadd.f32 %v1131, %v1429
    %v1431 = vpop.f32.mrb[0].mxu0
    %1432 = vmatprep.mubr.f32.mxu0 0.0
    %v1433 = vand.u32 %v260, 4294901760
    %v1434 = vsub.f32 %v260, %v1433
    %v1435 = vand.u32 %v1434, 4294901760
    %1436 = vmatmul.mubr.f32.gmra.mrb[0].mxu0 %v1435
    %v1437 = vpop.f32.mrb[0].mxu0
    %v1438 = vadd.f32 %v1138, %v1437
    %v1439 = vpop.f32.mrb[0].mxu0
    %1440 = vmatprep.mubr.f32.mxu0 0.0
    %v1441 = vand.u32 %v263, 4294901760
    %v1442 = vsub.f32 %v263, %v1441
    %v1443 = vand.u32 %v1442, 4294901760
    %1444 = vmatmul.mubr.f32.gmra.mrb[0].mxu0 %v1443
    %v1445 = vpop.f32.mrb[0].mxu0
    %v1446 = vadd.f32 %v1145, %v1445
    %v1447 = vpop.f32.mrb[0].mxu0
    %1448 = vmatprep.mubr.f32.mxu0 0.0
    %v1449 = vand.u32 %v266, 4294901760
    %v1450 = vsub.f32 %v266, %v1449
    %v1451 = vand.u32 %v1450, 4294901760
    %1452 = vmatmul.mubr.f32.gmra.mrb[0].mxu0 %v1451
    %v1453 = vpop.f32.mrb[0].mxu0
    %v1454 = vadd.f32 %v1152, %v1453
    %v1455 = vpop.f32.mrb[0].mxu0
    %1456 = vmatprep.mubr.f32.mxu0 0.0
    %v1457 = vand.u32 %v269, 4294901760
    %v1458 = vsub.f32 %v269, %v1457
    %v1459 = vand.u32 %v1458, 4294901760
    %1460 = vmatmul.mubr.f32.gmra.mrb[0].mxu0 %v1459
    %v1461 = vpop.f32.mrb[0].mxu0
    %v1462 = vadd.f32 %v1159, %v1461
    %v1463 = vpop.f32.mrb[0].mxu0
    %1464 = vmatprep.mubr.f32.mxu0 0.0
    %v1465 = vand.u32 %v272, 4294901760
    %v1466 = vsub.f32 %v272, %v1465
    %v1467 = vand.u32 %v1466, 4294901760
    %1468 = vmatmul.mubr.f32.gmra.mrb[0].mxu0 %v1467
    %v1469 = vpop.f32.mrb[0].mxu0
    %v1470 = vadd.f32 %v1166, %v1469
    %v1471 = vpop.f32.mrb[0].mxu0
    %1472 = vmatprep.mubr.f32.mxu0 0.0
    %v1473 = vand.u32 %v275, 4294901760
    %v1474 = vsub.f32 %v275, %v1473
    %v1475 = vand.u32 %v1474, 4294901760
    %1476 = vmatmul.mubr.f32.gmra.mrb[0].mxu0 %v1475
    %v1477 = vpop.f32.mrb[0].mxu0
    %v1478 = vadd.f32 %v1173, %v1477
    %v1479 = vpop.f32.mrb[0].mxu0
    %1480 = vmatprep.mubr.f32.mxu0 0.0
    %v1481 = vand.u32 %v278, 4294901760
    %v1482 = vsub.f32 %v278, %v1481
    %v1483 = vand.u32 %v1482, 4294901760
    %1484 = vmatmul.mubr.f32.gmra.mrb[0].mxu0 %v1483
    %v1485 = vpop.f32.mrb[0].mxu0
    %v1486 = vadd.f32 %v1180, %v1485
    %v1487 = vpop.f32.mrb[0].mxu0
    %1488 = vmatprep.mubr.f32.mxu0 0.0
    %v1489 = vand.u32 %v281, 4294901760
    %v1490 = vsub.f32 %v281, %v1489
    %v1491 = vand.u32 %v1490, 4294901760
    %1492 = vmatmul.mubr.f32.gmra.mrb[0].mxu0 %v1491
    %v1493 = vpop.f32.mrb[0].mxu0
    %v1494 = vadd.f32 %v1187, %v1493
    %v1495 = vpop.f32.mrb[0].mxu0
    %1496 = vmatprep.mubr.f32.mxu0 0.0
    %v1497 = vand.u32 %v284, 4294901760
    %v1498 = vsub.f32 %v284, %v1497
    %v1499 = vand.u32 %v1498, 4294901760
    %1500 = vmatmul.mubr.f32.gmra.mrb[0].mxu0 %v1499
    %v1501 = vpop.f32.mrb[0].mxu0
    %v1502 = vadd.f32 %v1194, %v1501
    %v1503 = vpop.f32.mrb[0].mxu0
    %1504 = vmatprep.mubr.f32.mxu0 0.0
    %v1505 = vand.u32 %v287, 4294901760
    %v1506 = vsub.f32 %v287, %v1505
    %v1507 = vand.u32 %v1506, 4294901760
    %1508 = vmatmul.mubr.f32.gmra.mrb[0].mxu0 %v1507
    %v1509 = vpop.f32.mrb[0].mxu0
    %v1510 = vadd.f32 %v1201, %v1509
    %v1511 = vpop.f32.mrb[0].mxu0
    %1512 = vmatprep.mubr.f32.mxu0 0.0
    %v1513 = vand.u32 %v290, 4294901760
    %v1514 = vsub.f32 %v290, %v1513
    %v1515 = vand.u32 %v1514, 4294901760
    %1516 = vmatmul.mubr.f32.gmra.mrb[0].mxu0 %v1515
    %v1517 = vpop.f32.mrb[0].mxu0
    %v1518 = vadd.f32 %v1208, %v1517
    %v1519 = vpop.f32.mrb[0].mxu0
    %1520 = vmatprep.mubr.f32.mxu0 0.0
    %v1521 = vand.u32 %v293, 4294901760
    %v1522 = vsub.f32 %v293, %v1521
    %v1523 = vand.u32 %v1522, 4294901760
    %1524 = vmatmul.mubr.f32.gmra.mrb[0].mxu0 %v1523
    %v1525 = vpop.f32.mrb[0].mxu0
    %v1526 = vadd.f32 %v1215, %v1525
    %v1527 = vpop.f32.mrb[0].mxu0
    %1528 = vmatprep.mubr.f32.mxu0 0.0
    %v1529 = vand.u32 %v296, 4294901760
    %v1530 = vsub.f32 %v296, %v1529
    %v1531 = vand.u32 %v1530, 4294901760
    %1532 = vmatmul.mubr.f32.gmra.mrb[0].mxu0 %v1531
    %v1533 = vpop.f32.mrb[0].mxu0
    %v1534 = vadd.f32 %v1222, %v1533
    %v1535 = vpop.f32.mrb[0].mxu0
    %1536 = vmatprep.mubr.f32.mxu0 0.0
    %v1537 = vand.u32 %v299, 4294901760
    %v1538 = vsub.f32 %v299, %v1537
    %v1539 = vand.u32 %v1538, 4294901760
    %1540 = vmatmul.mubr.f32.gmra.mrb[0].mxu0 %v1539
    %v1541 = vpop.f32.mrb[0].mxu0
    %v1542 = vadd.f32 %v1229, %v1541
    %v1543 = vpop.f32.mrb[0].mxu0
    %1544 = vmatprep.mubr.f32.mxu0 0.0
    %v1545 = vand.u32 %v302, 4294901760
    %v1546 = vsub.f32 %v302, %v1545
    %v1547 = vand.u32 %v1546, 4294901760
    %1548 = vmatmul.mubr.f32.gmra.mrb[0].mxu0 %v1547
    %v1549 = vpop.f32.mrb[0].mxu0
    %v1550 = vadd.f32 %v1236, %v1549
    %v1551 = vpop.f32.mrb[0].mxu0
    %1552 = vmatprep.mubr.f32.mxu0 0.0
    %v1553 = vand.u32 %v305, 4294901760
    %v1554 = vsub.f32 %v305, %v1553
    %v1555 = vand.u32 %v1554, 4294901760
    %1556 = vmatmul.mubr.f32.gmra.mrb[0].mxu0 %v1555
    %v1557 = vpop.f32.mrb[0].mxu0
    %v1558 = vadd.f32 %v1243, %v1557
    %v1559 = vpop.f32.mrb[0].mxu0
    %1560 = vmatprep.mubr.f32.mxu0 0.0
    %v1561 = vand.u32 %v308, 4294901760
    %v1562 = vsub.f32 %v308, %v1561
    %v1563 = vand.u32 %v1562, 4294901760
    %1564 = vmatmul.mubr.f32.gmra.mrb[0].mxu0 %v1563
    %v1565 = vpop.f32.mrb[0].mxu0
    %v1566 = vadd.f32 %v1250, %v1565
    %v1567 = vpop.f32.mrb[0].mxu0
    %1568 = vmatprep.mubr.f32.mxu0 0.0
    %v1569 = vand.u32 %v311, 4294901760
    %v1570 = vsub.f32 %v311, %v1569
    %v1571 = vand.u32 %v1570, 4294901760
    %1572 = vmatmul.mubr.f32.gmra.mrb[0].mxu0 %v1571
    %v1573 = vpop.f32.mrb[0].mxu0
    %v1574 = vadd.f32 %v1257, %v1573
    %v1575 = vpop.f32.mrb[0].mxu0
    %1576 = vmatprep.mubr.f32.mxu0 0.0
    %v1577 = vand.u32 %v314, 4294901760
    %v1578 = vsub.f32 %v314, %v1577
    %v1579 = vand.u32 %v1578, 4294901760
    %1580 = vmatmul.mubr.f32.gmra.mrb[0].mxu0 %v1579
    %v1581 = vpop.f32.mrb[0].mxu0
    %v1582 = vadd.f32 %v1264, %v1581
    %v1583 = vpop.f32.mrb[0].mxu0
    %1584 = vmatprep.mubr.f32.mxu0 0.0
    %v1585 = vand.u32 %v317, 4294901760
    %v1586 = vsub.f32 %v317, %v1585
    %v1587 = vand.u32 %v1586, 4294901760
    %1588 = vmatmul.mubr.f32.gmra.mrb[0].mxu0 %v1587
    %v1589 = vpop.f32.mrb[0].mxu0
    %v1590 = vadd.f32 %v1271, %v1589
    %v1591 = vpop.f32.mrb[0].mxu0
    %1592 = vmatprep.mubr.f32.mxu0 0.0
    %v1593 = vand.u32 %v320, 4294901760
    %v1594 = vsub.f32 %v320, %v1593
    %v1595 = vand.u32 %v1594, 4294901760
    %1596 = vmatmul.mubr.f32.gmra.mrb[0].mxu0 %v1595
    %v1597 = vpop.f32.mrb[0].mxu0
    %v1598 = vadd.f32 %v1278, %v1597
    %v1599 = vpop.f32.mrb[0].mxu0
    %1600 = vmatprep.mubr.f32.mxu0 0.0
    %v1601 = vand.u32 %v323, 4294901760
    %v1602 = vsub.f32 %v323, %v1601
    %v1603 = vand.u32 %v1602, 4294901760
    %1604 = vmatmul.mubr.f32.gmra.mrb[0].mxu0 %v1603
    %v1605 = vpop.f32.mrb[0].mxu0
    %v1606 = vadd.f32 %v1285, %v1605
    %v1607 = vpop.f32.mrb[0].mxu0
    %1608 = vmatprep.mubr.f32.mxu0 0.0
    %v1609 = vand.u32 %v326, 4294901760
    %v1610 = vsub.f32 %v326, %v1609
    %v1611 = vand.u32 %v1610, 4294901760
    %1612 = vmatmul.mubr.f32.gmra.mrb[0].mxu0 %v1611
    %v1613 = vpop.f32.mrb[0].mxu0
    %v1614 = vadd.f32 %v1292, %v1613
    %v1615 = vpop.f32.mrb[0].mxu0
    %1616 = vmatprep.mubr.f32.mxu0 0.0
    %v1617 = vand.u32 %v329, 4294901760
    %v1618 = vsub.f32 %v329, %v1617
    %v1619 = vand.u32 %v1618, 4294901760
    %1620 = vmatmul.mubr.f32.gmra.mrb[0].mxu0 %v1619
    %v1621 = vpop.f32.mrb[0].mxu0
    %v1622 = vadd.f32 %v1299, %v1621
    %v1623 = vpop.f32.mrb[0].mxu0
    %1624 = vmatprep.mubr.f32.mxu0 0.0
    %v1625 = vand.u32 %v332, 4294901760
    %v1626 = vsub.f32 %v332, %v1625
    %v1627 = vand.u32 %v1626, 4294901760
    %1628 = vmatmul.mubr.f32.gmra.mrb[0].mxu0 %v1627
    %v1629 = vpop.f32.mrb[0].mxu0
    %v1630 = vadd.f32 %v1306, %v1629
    %v1631 = vpop.f32.mrb[0].mxu0
    %1632 = vmatprep.mubr.f32.mxu0 0.0
    %v1633 = vand.u32 %v335, 4294901760
    %v1634 = vsub.f32 %v335, %v1633
    %v1635 = vand.u32 %v1634, 4294901760
    %1636 = vmatmul.mubr.f32.gmra.mrb[0].mxu0 %v1635
    %v1637 = vpop.f32.mrb[0].mxu0
    %v1638 = vadd.f32 %v1313, %v1637
    %v1639 = vpop.f32.mrb[0].mxu0
    %1640 = vmatprep.mubr.f32.mxu0 0.0
    %v1641 = vand.u32 %v338, 4294901760
    %v1642 = vsub.f32 %v338, %v1641
    %v1643 = vand.u32 %v1642, 4294901760
    %1644 = vmatmul.mubr.f32.gmra.mrb[0].mxu0 %v1643
    %v1645 = vpop.f32.mrb[0].mxu0
    %v1646 = vadd.f32 %v1320, %v1645
    %v1647 = vpop.f32.mrb[0].mxu0
    %1648 = vmatprep.mubr.f32.mxu0 0.0
    %v1649 = vand.u32 %v341, 4294901760
    %v1650 = vsub.f32 %v341, %v1649
    %v1651 = vand.u32 %v1650, 4294901760
    %1652 = vmatmul.mubr.f32.gmra.mrb[0].mxu0 %v1651
    %v1653 = vpop.f32.mrb[0].mxu0
    %v1654 = vadd.f32 %v1327, %v1653
    %v1655 = vpop.f32.mrb[0].mxu0
    %1656 = vmatprep.mubr.f32.mxu0 0.0
    %v1657 = vand.u32 %v344, 4294901760
    %v1658 = vsub.f32 %v344, %v1657
    %v1659 = vand.u32 %v1658, 4294901760
    %1660 = vmatmul.mubr.f32.gmra.mrb[0].mxu0 %v1659
    %v1661 = vpop.f32.mrb[0].mxu0
    %v1662 = vadd.f32 %v1334, %v1661
    %v1663 = vpop.f32.mrb[0].mxu0
    %1664 = vmatprep.mubr.f32.mxu0 0.0
    %v1665 = vand.u32 %v347, 4294901760
    %v1666 = vsub.f32 %v347, %v1665
    %v1667 = vand.u32 %v1666, 4294901760
    %1668 = vmatmul.mubr.f32.gmra.mrb[0].mxu0 %v1667
    %v1669 = vpop.f32.mrb[0].mxu0
    %v1670 = vadd.f32 %v1341, %v1669
    %v1671 = vpop.f32.mrb[0].mxu0
    %1672 = vdwg.mxu0
    %1673 = vmatprep.subr.mxu0 0.0
    %v1674 = vand.u32 %v244, 4294901760
    %v1675 = vsub.f32 %v244, %v1674
    %v1676 = vand.u32 %v1675, 4294901760
    %1677 = vmatpush1.msra.mxu0 %v1676
    %1678 = vmatprep.subr.mxu0 0.0
    %v1679 = vand.u32 %v245, 4294901760
    %v1680 = vsub.f32 %v245, %v1679
    %v1681 = vand.u32 %v1680, 4294901760
    %1682 = vmatpush1.msra.mxu0 %v1681
    %1683 = vmatprep.subr.mxu0 0.0
    %v1684 = vand.u32 %v246, 4294901760
    %v1685 = vsub.f32 %v246, %v1684
    %v1686 = vand.u32 %v1685, 4294901760
    %1687 = vmatpush1.msra.mxu0 %v1686
    %1688 = vmatprep.subr.mxu0 0.0
    %v1689 = vand.u32 %v247, 4294901760
    %v1690 = vsub.f32 %v247, %v1689
    %v1691 = vand.u32 %v1690, 4294901760
    %1692 = vmatpush1.msra.mxu0 %v1691
    %1693 = vmatprep.subr.mxu0 0.0
    %v1694 = vand.u32 %v248, 4294901760
    %v1695 = vsub.f32 %v248, %v1694
    %v1696 = vand.u32 %v1695, 4294901760
    %1697 = vmatpush1.msra.mxu0 %v1696
    %1698 = vmatprep.subr.mxu0 0.0
    %v1699 = vand.u32 %v249, 4294901760
    %v1700 = vsub.f32 %v249, %v1699
    %v1701 = vand.u32 %v1700, 4294901760
    %1702 = vmatpush1.msra.mxu0 %v1701
    %1703 = vmatprep.subr.mxu0 0.0
    %v1704 = vand.u32 %v250, 4294901760
    %v1705 = vsub.f32 %v250, %v1704
    %v1706 = vand.u32 %v1705, 4294901760
    %1707 = vmatpush1.msra.mxu0 %v1706
    %1708 = vmatprep.subr.mxu0 0.0
    %v1709 = vand.u32 %v251, 4294901760
    %v1710 = vsub.f32 %v251, %v1709
    %v1711 = vand.u32 %v1710, 4294901760
    %1712 = vmatpush1.msra.mxu0 %v1711
    %1713 = vmatprep.subr.mxu0 0.0
    %1714 = vmatpush1.msra.mxu0 0.0
    %1715 = vmatprep.subr.mxu0 0.0
    %1716 = vmatpush1.msra.mxu0 0.0
    %1717 = vmatprep.subr.mxu0 0.0
    %1718 = vmatpush1.msra.mxu0 0.0
    %1719 = vmatprep.subr.mxu0 0.0
    %1720 = vmatpush1.msra.mxu0 0.0
    %1721 = vmatprep.subr.mxu0 0.0
    %1722 = vmatpush1.msra.mxu0 0.0
    %1723 = vmatprep.subr.mxu0 0.0
    %1724 = vmatpush1.msra.mxu0 0.0
    %1725 = vmatprep.subr.mxu0 0.0
    %1726 = vmatpush1.msra.mxu0 0.0
    %1727 = vmatprep.subr.mxu0 0.0
    %1728 = vmatpush1.msra.mxu0 0.0
    %1729 = vmatprep.subr.mxu0 0.0
    %1730 = vmatpush1.msra.mxu0 0.0
    %1731 = vmatprep.subr.mxu0 0.0
    %1732 = vmatpush1.msra.mxu0 0.0
    %1733 = vmatprep.subr.mxu0 0.0
    %1734 = vmatpush1.msra.mxu0 0.0
    %1735 = vmatprep.subr.mxu0 0.0
    %1736 = vmatpush1.msra.mxu0 0.0
    %1737 = vmatprep.subr.mxu0 0.0
    %1738 = vmatpush1.msra.mxu0 0.0
    %1739 = vmatprep.subr.mxu0 0.0
    %1740 = vmatpush1.msra.mxu0 0.0
    %1741 = vmatprep.subr.mxu0 0.0
    %1742 = vmatpush1.msra.mxu0 0.0
    %1743 = vmatprep.subr.mxu0 0.0
    %1744 = vmatpush1.msra.mxu0 0.0
    %1745 = vmatprep.subr.mxu0 0.0
    %1746 = vmatpush1.msra.mxu0 0.0
    %1747 = vmatprep.subr.mxu0 0.0
    %1748 = vmatpush1.msra.mxu0 0.0
    %1749 = vmatprep.subr.mxu0 0.0
    %1750 = vmatpush1.msra.mxu0 0.0
    %1751 = vmatprep.subr.mxu0 0.0
    %1752 = vmatpush1.msra.mxu0 0.0
    %1753 = vmatprep.subr.mxu0 0.0
    %1754 = vmatpush1.msra.mxu0 0.0
    %1755 = vmatprep.subr.mxu0 0.0
    %1756 = vmatpush1.msra.mxu0 0.0
    %1757 = vmatprep.subr.mxu0 0.0
    %1758 = vmatpush1.msra.mxu0 0.0
    %1759 = vmatprep.subr.mxu0 0.0
    %1760 = vmatpush1.msra.mxu0 0.0
    %1761 = vmatprep.mubr.f32.mxu0 0.0
    %v1762 = vand.u32 %v254, 4294901760
    %1763 = vmatmul.mubr.f32.gmra.mrb[0].mxu0 %v1762
    %v1764 = vpop.f32.mrb[0].mxu0
    %v1765 = vadd.f32 %v1422, %v1764
    %v1766 = vpop.f32.mrb[0].mxu0
    %1767 = vmatprep.mubr.f32.mxu0 0.0
    %v1768 = vand.u32 %v257, 4294901760
    %1769 = vmatmul.mubr.f32.gmra.mrb[0].mxu0 %v1768
    %v1770 = vpop.f32.mrb[0].mxu0
    %v1771 = vadd.f32 %v1430, %v1770
    %v1772 = vpop.f32.mrb[0].mxu0
    %1773 = vmatprep.mubr.f32.mxu0 0.0
    %v1774 = vand.u32 %v260, 4294901760
    %1775 = vmatmul.mubr.f32.gmra.mrb[0].mxu0 %v1774
    %v1776 = vpop.f32.mrb[0].mxu0
    %v1777 = vadd.f32 %v1438, %v1776
    %v1778 = vpop.f32.mrb[0].mxu0
    %1779 = vmatprep.mubr.f32.mxu0 0.0
    %v1780 = vand.u32 %v263, 4294901760
    %1781 = vmatmul.mubr.f32.gmra.mrb[0].mxu0 %v1780
    %v1782 = vpop.f32.mrb[0].mxu0
    %v1783 = vadd.f32 %v1446, %v1782
    %v1784 = vpop.f32.mrb[0].mxu0
    %1785 = vmatprep.mubr.f32.mxu0 0.0
    %v1786 = vand.u32 %v266, 4294901760
    %1787 = vmatmul.mubr.f32.gmra.mrb[0].mxu0 %v1786
    %v1788 = vpop.f32.mrb[0].mxu0
    %v1789 = vadd.f32 %v1454, %v1788
    %v1790 = vpop.f32.mrb[0].mxu0
    %1791 = vmatprep.mubr.f32.mxu0 0.0
    %v1792 = vand.u32 %v269, 4294901760
    %1793 = vmatmul.mubr.f32.gmra.mrb[0].mxu0 %v1792
    %v1794 = vpop.f32.mrb[0].mxu0
    %v1795 = vadd.f32 %v1462, %v1794
    %v1796 = vpop.f32.mrb[0].mxu0
    %1797 = vmatprep.mubr.f32.mxu0 0.0
    %v1798 = vand.u32 %v272, 4294901760
    %1799 = vmatmul.mubr.f32.gmra.mrb[0].mxu0 %v1798
    %v1800 = vpop.f32.mrb[0].mxu0
    %v1801 = vadd.f32 %v1470, %v1800
    %v1802 = vpop.f32.mrb[0].mxu0
    %1803 = vmatprep.mubr.f32.mxu0 0.0
    %v1804 = vand.u32 %v275, 4294901760
    %1805 = vmatmul.mubr.f32.gmra.mrb[0].mxu0 %v1804
    %v1806 = vpop.f32.mrb[0].mxu0
    %v1807 = vadd.f32 %v1478, %v1806
    %v1808 = vpop.f32.mrb[0].mxu0
    %1809 = vmatprep.mubr.f32.mxu0 0.0
    %v1810 = vand.u32 %v278, 4294901760
    %1811 = vmatmul.mubr.f32.gmra.mrb[0].mxu0 %v1810
    %v1812 = vpop.f32.mrb[0].mxu0
    %v1813 = vadd.f32 %v1486, %v1812
    %v1814 = vpop.f32.mrb[0].mxu0
    %1815 = vmatprep.mubr.f32.mxu0 0.0
    %v1816 = vand.u32 %v281, 4294901760
    %1817 = vmatmul.mubr.f32.gmra.mrb[0].mxu0 %v1816
    %v1818 = vpop.f32.mrb[0].mxu0
    %v1819 = vadd.f32 %v1494, %v1818
    %v1820 = vpop.f32.mrb[0].mxu0
    %1821 = vmatprep.mubr.f32.mxu0 0.0
    %v1822 = vand.u32 %v284, 4294901760
    %1823 = vmatmul.mubr.f32.gmra.mrb[0].mxu0 %v1822
    %v1824 = vpop.f32.mrb[0].mxu0
    %v1825 = vadd.f32 %v1502, %v1824
    %v1826 = vpop.f32.mrb[0].mxu0
    %1827 = vmatprep.mubr.f32.mxu0 0.0
    %v1828 = vand.u32 %v287, 4294901760
    %1829 = vmatmul.mubr.f32.gmra.mrb[0].mxu0 %v1828
    %v1830 = vpop.f32.mrb[0].mxu0
    %v1831 = vadd.f32 %v1510, %v1830
    %v1832 = vpop.f32.mrb[0].mxu0
    %1833 = vmatprep.mubr.f32.mxu0 0.0
    %v1834 = vand.u32 %v290, 4294901760
    %1835 = vmatmul.mubr.f32.gmra.mrb[0].mxu0 %v1834
    %v1836 = vpop.f32.mrb[0].mxu0
    %v1837 = vadd.f32 %v1518, %v1836
    %v1838 = vpop.f32.mrb[0].mxu0
    %1839 = vmatprep.mubr.f32.mxu0 0.0
    %v1840 = vand.u32 %v293, 4294901760
    %1841 = vmatmul.mubr.f32.gmra.mrb[0].mxu0 %v1840
    %v1842 = vpop.f32.mrb[0].mxu0
    %v1843 = vadd.f32 %v1526, %v1842
    %v1844 = vpop.f32.mrb[0].mxu0
    %1845 = vmatprep.mubr.f32.mxu0 0.0
    %v1846 = vand.u32 %v296, 4294901760
    %1847 = vmatmul.mubr.f32.gmra.mrb[0].mxu0 %v1846
    %v1848 = vpop.f32.mrb[0].mxu0
    %v1849 = vadd.f32 %v1534, %v1848
    %v1850 = vpop.f32.mrb[0].mxu0
    %1851 = vmatprep.mubr.f32.mxu0 0.0
    %v1852 = vand.u32 %v299, 4294901760
    %1853 = vmatmul.mubr.f32.gmra.mrb[0].mxu0 %v1852
    %v1854 = vpop.f32.mrb[0].mxu0
    %v1855 = vadd.f32 %v1542, %v1854
    %v1856 = vpop.f32.mrb[0].mxu0
    %1857 = vmatprep.mubr.f32.mxu0 0.0
    %v1858 = vand.u32 %v302, 4294901760
    %1859 = vmatmul.mubr.f32.gmra.mrb[0].mxu0 %v1858
    %v1860 = vpop.f32.mrb[0].mxu0
    %v1861 = vadd.f32 %v1550, %v1860
    %v1862 = vpop.f32.mrb[0].mxu0
    %1863 = vmatprep.mubr.f32.mxu0 0.0
    %v1864 = vand.u32 %v305, 4294901760
    %1865 = vmatmul.mubr.f32.gmra.mrb[0].mxu0 %v1864
    %v1866 = vpop.f32.mrb[0].mxu0
    %v1867 = vadd.f32 %v1558, %v1866
    %v1868 = vpop.f32.mrb[0].mxu0
    %1869 = vmatprep.mubr.f32.mxu0 0.0
    %v1870 = vand.u32 %v308, 4294901760
    %1871 = vmatmul.mubr.f32.gmra.mrb[0].mxu0 %v1870
    %v1872 = vpop.f32.mrb[0].mxu0
    %v1873 = vadd.f32 %v1566, %v1872
    %v1874 = vpop.f32.mrb[0].mxu0
    %1875 = vmatprep.mubr.f32.mxu0 0.0
    %v1876 = vand.u32 %v311, 4294901760
    %1877 = vmatmul.mubr.f32.gmra.mrb[0].mxu0 %v1876
    %v1878 = vpop.f32.mrb[0].mxu0
    %v1879 = vadd.f32 %v1574, %v1878
    %v1880 = vpop.f32.mrb[0].mxu0
    %1881 = vmatprep.mubr.f32.mxu0 0.0
    %v1882 = vand.u32 %v314, 4294901760
    %1883 = vmatmul.mubr.f32.gmra.mrb[0].mxu0 %v1882
    %v1884 = vpop.f32.mrb[0].mxu0
    %v1885 = vadd.f32 %v1582, %v1884
    %v1886 = vpop.f32.mrb[0].mxu0
    %1887 = vmatprep.mubr.f32.mxu0 0.0
    %v1888 = vand.u32 %v317, 4294901760
    %1889 = vmatmul.mubr.f32.gmra.mrb[0].mxu0 %v1888
    %v1890 = vpop.f32.mrb[0].mxu0
    %v1891 = vadd.f32 %v1590, %v1890
    %v1892 = vpop.f32.mrb[0].mxu0
    %1893 = vmatprep.mubr.f32.mxu0 0.0
    %v1894 = vand.u32 %v320, 4294901760
    %1895 = vmatmul.mubr.f32.gmra.mrb[0].mxu0 %v1894
    %v1896 = vpop.f32.mrb[0].mxu0
    %v1897 = vadd.f32 %v1598, %v1896
    %v1898 = vpop.f32.mrb[0].mxu0
    %1899 = vmatprep.mubr.f32.mxu0 0.0
    %v1900 = vand.u32 %v323, 4294901760
    %1901 = vmatmul.mubr.f32.gmra.mrb[0].mxu0 %v1900
    %v1902 = vpop.f32.mrb[0].mxu0
    %v1903 = vadd.f32 %v1606, %v1902
    %v1904 = vpop.f32.mrb[0].mxu0
    %1905 = vmatprep.mubr.f32.mxu0 0.0
    %v1906 = vand.u32 %v326, 4294901760
    %1907 = vmatmul.mubr.f32.gmra.mrb[0].mxu0 %v1906
    %v1908 = vpop.f32.mrb[0].mxu0
    %v1909 = vadd.f32 %v1614, %v1908
    %v1910 = vpop.f32.mrb[0].mxu0
    %1911 = vmatprep.mubr.f32.mxu0 0.0
    %v1912 = vand.u32 %v329, 4294901760
    %1913 = vmatmul.mubr.f32.gmra.mrb[0].mxu0 %v1912
    %v1914 = vpop.f32.mrb[0].mxu0
    %v1915 = vadd.f32 %v1622, %v1914
    %v1916 = vpop.f32.mrb[0].mxu0
    %1917 = vmatprep.mubr.f32.mxu0 0.0
    %v1918 = vand.u32 %v332, 4294901760
    %1919 = vmatmul.mubr.f32.gmra.mrb[0].mxu0 %v1918
    %v1920 = vpop.f32.mrb[0].mxu0
    %v1921 = vadd.f32 %v1630, %v1920
    %v1922 = vpop.f32.mrb[0].mxu0
    %1923 = vmatprep.mubr.f32.mxu0 0.0
    %v1924 = vand.u32 %v335, 4294901760
    %1925 = vmatmul.mubr.f32.gmra.mrb[0].mxu0 %v1924
    %v1926 = vpop.f32.mrb[0].mxu0
    %v1927 = vadd.f32 %v1638, %v1926
    %v1928 = vpop.f32.mrb[0].mxu0
    %1929 = vmatprep.mubr.f32.mxu0 0.0
    %v1930 = vand.u32 %v338, 4294901760
    %1931 = vmatmul.mubr.f32.gmra.mrb[0].mxu0 %v1930
    %v1932 = vpop.f32.mrb[0].mxu0
    %v1933 = vadd.f32 %v1646, %v1932
    %v1934 = vpop.f32.mrb[0].mxu0
    %1935 = vmatprep.mubr.f32.mxu0 0.0
    %v1936 = vand.u32 %v341, 4294901760
    %1937 = vmatmul.mubr.f32.gmra.mrb[0].mxu0 %v1936
    %v1938 = vpop.f32.mrb[0].mxu0
    %v1939 = vadd.f32 %v1654, %v1938
    %v1940 = vpop.f32.mrb[0].mxu0
    %1941 = vmatprep.mubr.f32.mxu0 0.0
    %v1942 = vand.u32 %v344, 4294901760
    %1943 = vmatmul.mubr.f32.gmra.mrb[0].mxu0 %v1942
    %v1944 = vpop.f32.mrb[0].mxu0
    %v1945 = vadd.f32 %v1662, %v1944
    %v1946 = vpop.f32.mrb[0].mxu0
    %1947 = vmatprep.mubr.f32.mxu0 0.0
    %v1948 = vand.u32 %v347, 4294901760
    %1949 = vmatmul.mubr.f32.gmra.mrb[0].mxu0 %v1948
    %v1950 = vpop.f32.mrb[0].mxu0
    %v1951 = vadd.f32 %v1670, %v1950
    %v1952 = vpop.f32.mrb[0].mxu0
    %1953 = vdwg.mxu0
    %1954 = vmatprep.subr.mxu0 0.0
    %v1955 = vand.u32 %v244, 4294901760
    %1956 = vmatpush1.msra.mxu0 %v1955
    %1957 = vmatprep.subr.mxu0 0.0
    %v1958 = vand.u32 %v245, 4294901760
    %1959 = vmatpush1.msra.mxu0 %v1958
    %1960 = vmatprep.subr.mxu0 0.0
    %v1961 = vand.u32 %v246, 4294901760
    %1962 = vmatpush1.msra.mxu0 %v1961
    %1963 = vmatprep.subr.mxu0 0.0
    %v1964 = vand.u32 %v247, 4294901760
    %1965 = vmatpush1.msra.mxu0 %v1964
    %1966 = vmatprep.subr.mxu0 0.0
    %v1967 = vand.u32 %v248, 4294901760
    %1968 = vmatpush1.msra.mxu0 %v1967
    %1969 = vmatprep.subr.mxu0 0.0
    %v1970 = vand.u32 %v249, 4294901760
    %1971 = vmatpush1.msra.mxu0 %v1970
    %1972 = vmatprep.subr.mxu0 0.0
    %v1973 = vand.u32 %v250, 4294901760
    %1974 = vmatpush1.msra.mxu0 %v1973
    %1975 = vmatprep.subr.mxu0 0.0
    %v1976 = vand.u32 %v251, 4294901760
    %1977 = vmatpush1.msra.mxu0 %v1976
    %1978 = vmatprep.subr.mxu0 0.0
    %1979 = vmatpush1.msra.mxu0 0.0
    %1980 = vmatprep.subr.mxu0 0.0
    %1981 = vmatpush1.msra.mxu0 0.0
    %1982 = vmatprep.subr.mxu0 0.0
    %1983 = vmatpush1.msra.mxu0 0.0
    %1984 = vmatprep.subr.mxu0 0.0
    %1985 = vmatpush1.msra.mxu0 0.0
    %1986 = vmatprep.subr.mxu0 0.0
    %1987 = vmatpush1.msra.mxu0 0.0
    %1988 = vmatprep.subr.mxu0 0.0
    %1989 = vmatpush1.msra.mxu0 0.0
    %1990 = vmatprep.subr.mxu0 0.0
    %1991 = vmatpush1.msra.mxu0 0.0
    %1992 = vmatprep.subr.mxu0 0.0
    %1993 = vmatpush1.msra.mxu0 0.0
    %1994 = vmatprep.subr.mxu0 0.0
    %1995 = vmatpush1.msra.mxu0 0.0
    %1996 = vmatprep.subr.mxu0 0.0
    %1997 = vmatpush1.msra.mxu0 0.0
    %1998 = vmatprep.subr.mxu0 0.0
    %1999 = vmatpush1.msra.mxu0 0.0
    %2000 = vmatprep.subr.mxu0 0.0
    %2001 = vmatpush1.msra.mxu0 0.0
    %2002 = vmatprep.subr.mxu0 0.0
    %2003 = vmatpush1.msra.mxu0 0.0
    %2004 = vmatprep.subr.mxu0 0.0
    %2005 = vmatpush1.msra.mxu0 0.0
    %2006 = vmatprep.subr.mxu0 0.0
    %2007 = vmatpush1.msra.mxu0 0.0
    %2008 = vmatprep.subr.mxu0 0.0
    %2009 = vmatpush1.msra.mxu0 0.0
    %2010 = vmatprep.subr.mxu0 0.0
    %2011 = vmatpush1.msra.mxu0 0.0
    %2012 = vmatprep.subr.mxu0 0.0
    %2013 = vmatpush1.msra.mxu0 0.0
    %2014 = vmatprep.subr.mxu0 0.0
    %2015 = vmatpush1.msra.mxu0 0.0
    %2016 = vmatprep.subr.mxu0 0.0
    %2017 = vmatpush1.msra.mxu0 0.0
    %2018 = vmatprep.subr.mxu0 0.0
    %2019 = vmatpush1.msra.mxu0 0.0
    %2020 = vmatprep.subr.mxu0 0.0
    %2021 = vmatpush1.msra.mxu0 0.0
    %2022 = vmatprep.subr.mxu0 0.0
    %2023 = vmatpush1.msra.mxu0 0.0
    %2024 = vmatprep.subr.mxu0 0.0
    %2025 = vmatpush1.msra.mxu0 0.0
    %2026 = vmatprep.mubr.f32.mxu0 0.0
    %v2027 = vand.u32 %v254, 4294901760
    %2028 = vmatmul.mubr.f32.gmra.mrb[0].mxu0 %v2027
    %v2029 = vpop.f32.mrb[0].mxu0
    %v2030 = vadd.f32 %v1765, %v2029
    %v2031 = vpop.f32.mrb[0].mxu0
    %2032 = vmatprep.mubr.f32.mxu0 0.0
    %v2033 = vand.u32 %v257, 4294901760
    %2034 = vmatmul.mubr.f32.gmra.mrb[0].mxu0 %v2033
    %v2035 = vpop.f32.mrb[0].mxu0
    %v2036 = vadd.f32 %v1771, %v2035
    %v2037 = vpop.f32.mrb[0].mxu0
    %2038 = vmatprep.mubr.f32.mxu0 0.0
    %v2039 = vand.u32 %v260, 4294901760
    %2040 = vmatmul.mubr.f32.gmra.mrb[0].mxu0 %v2039
    %v2041 = vpop.f32.mrb[0].mxu0
    %v2042 = vadd.f32 %v1777, %v2041
    %v2043 = vpop.f32.mrb[0].mxu0
    %2044 = vmatprep.mubr.f32.mxu0 0.0
    %v2045 = vand.u32 %v263, 4294901760
    %2046 = vmatmul.mubr.f32.gmra.mrb[0].mxu0 %v2045
    %v2047 = vpop.f32.mrb[0].mxu0
    %v2048 = vadd.f32 %v1783, %v2047
    %v2049 = vpop.f32.mrb[0].mxu0
    %2050 = vmatprep.mubr.f32.mxu0 0.0
    %v2051 = vand.u32 %v266, 4294901760
    %2052 = vmatmul.mubr.f32.gmra.mrb[0].mxu0 %v2051
    %v2053 = vpop.f32.mrb[0].mxu0
    %v2054 = vadd.f32 %v1789, %v2053
    %v2055 = vpop.f32.mrb[0].mxu0
    %2056 = vmatprep.mubr.f32.mxu0 0.0
    %v2057 = vand.u32 %v269, 4294901760
    %2058 = vmatmul.mubr.f32.gmra.mrb[0].mxu0 %v2057
    %v2059 = vpop.f32.mrb[0].mxu0
    %v2060 = vadd.f32 %v1795, %v2059
    %v2061 = vpop.f32.mrb[0].mxu0
    %2062 = vmatprep.mubr.f32.mxu0 0.0
    %v2063 = vand.u32 %v272, 4294901760
    %2064 = vmatmul.mubr.f32.gmra.mrb[0].mxu0 %v2063
    %v2065 = vpop.f32.mrb[0].mxu0
    %v2066 = vadd.f32 %v1801, %v2065
    %v2067 = vpop.f32.mrb[0].mxu0
    %2068 = vmatprep.mubr.f32.mxu0 0.0
    %v2069 = vand.u32 %v275, 4294901760
    %2070 = vmatmul.mubr.f32.gmra.mrb[0].mxu0 %v2069
    %v2071 = vpop.f32.mrb[0].mxu0
    %v2072 = vadd.f32 %v1807, %v2071
    %v2073 = vpop.f32.mrb[0].mxu0
    %2074 = vmatprep.mubr.f32.mxu0 0.0
    %v2075 = vand.u32 %v278, 4294901760
    %2076 = vmatmul.mubr.f32.gmra.mrb[0].mxu0 %v2075
    %v2077 = vpop.f32.mrb[0].mxu0
    %v2078 = vadd.f32 %v1813, %v2077
    %v2079 = vpop.f32.mrb[0].mxu0
    %2080 = vmatprep.mubr.f32.mxu0 0.0
    %v2081 = vand.u32 %v281, 4294901760
    %2082 = vmatmul.mubr.f32.gmra.mrb[0].mxu0 %v2081
    %v2083 = vpop.f32.mrb[0].mxu0
    %v2084 = vadd.f32 %v1819, %v2083
    %v2085 = vpop.f32.mrb[0].mxu0
    %2086 = vmatprep.mubr.f32.mxu0 0.0
    %v2087 = vand.u32 %v284, 4294901760
    %2088 = vmatmul.mubr.f32.gmra.mrb[0].mxu0 %v2087
    %v2089 = vpop.f32.mrb[0].mxu0
    %v2090 = vadd.f32 %v1825, %v2089
    %v2091 = vpop.f32.mrb[0].mxu0
    %2092 = vmatprep.mubr.f32.mxu0 0.0
    %v2093 = vand.u32 %v287, 4294901760
    %2094 = vmatmul.mubr.f32.gmra.mrb[0].mxu0 %v2093
    %v2095 = vpop.f32.mrb[0].mxu0
    %v2096 = vadd.f32 %v1831, %v2095
    %v2097 = vpop.f32.mrb[0].mxu0
    %2098 = vmatprep.mubr.f32.mxu0 0.0
    %v2099 = vand.u32 %v290, 4294901760
    %2100 = vmatmul.mubr.f32.gmra.mrb[0].mxu0 %v2099
    %v2101 = vpop.f32.mrb[0].mxu0
    %v2102 = vadd.f32 %v1837, %v2101
    %v2103 = vpop.f32.mrb[0].mxu0
    %2104 = vmatprep.mubr.f32.mxu0 0.0
    %v2105 = vand.u32 %v293, 4294901760
    %2106 = vmatmul.mubr.f32.gmra.mrb[0].mxu0 %v2105
    %v2107 = vpop.f32.mrb[0].mxu0
    %v2108 = vadd.f32 %v1843, %v2107
    %v2109 = vpop.f32.mrb[0].mxu0
    %2110 = vmatprep.mubr.f32.mxu0 0.0
    %v2111 = vand.u32 %v296, 4294901760
    %2112 = vmatmul.mubr.f32.gmra.mrb[0].mxu0 %v2111
    %v2113 = vpop.f32.mrb[0].mxu0
    %v2114 = vadd.f32 %v1849, %v2113
    %v2115 = vpop.f32.mrb[0].mxu0
    %2116 = vmatprep.mubr.f32.mxu0 0.0
    %v2117 = vand.u32 %v299, 4294901760
    %2118 = vmatmul.mubr.f32.gmra.mrb[0].mxu0 %v2117
    %v2119 = vpop.f32.mrb[0].mxu0
    %v2120 = vadd.f32 %v1855, %v2119
    %v2121 = vpop.f32.mrb[0].mxu0
    %2122 = vmatprep.mubr.f32.mxu0 0.0
    %v2123 = vand.u32 %v302, 4294901760
    %2124 = vmatmul.mubr.f32.gmra.mrb[0].mxu0 %v2123
    %v2125 = vpop.f32.mrb[0].mxu0
    %v2126 = vadd.f32 %v1861, %v2125
    %v2127 = vpop.f32.mrb[0].mxu0
    %2128 = vmatprep.mubr.f32.mxu0 0.0
    %v2129 = vand.u32 %v305, 4294901760
    %2130 = vmatmul.mubr.f32.gmra.mrb[0].mxu0 %v2129
    %v2131 = vpop.f32.mrb[0].mxu0
    %v2132 = vadd.f32 %v1867, %v2131
    %v2133 = vpop.f32.mrb[0].mxu0
    %2134 = vmatprep.mubr.f32.mxu0 0.0
    %v2135 = vand.u32 %v308, 4294901760
    %2136 = vmatmul.mubr.f32.gmra.mrb[0].mxu0 %v2135
    %v2137 = vpop.f32.mrb[0].mxu0
    %v2138 = vadd.f32 %v1873, %v2137
    %v2139 = vpop.f32.mrb[0].mxu0
    %2140 = vmatprep.mubr.f32.mxu0 0.0
    %v2141 = vand.u32 %v311, 4294901760
    %2142 = vmatmul.mubr.f32.gmra.mrb[0].mxu0 %v2141
    %v2143 = vpop.f32.mrb[0].mxu0
    %v2144 = vadd.f32 %v1879, %v2143
    %v2145 = vpop.f32.mrb[0].mxu0
    %2146 = vmatprep.mubr.f32.mxu0 0.0
    %v2147 = vand.u32 %v314, 4294901760
    %2148 = vmatmul.mubr.f32.gmra.mrb[0].mxu0 %v2147
    %v2149 = vpop.f32.mrb[0].mxu0
    %v2150 = vadd.f32 %v1885, %v2149
    %v2151 = vpop.f32.mrb[0].mxu0
    %2152 = vmatprep.mubr.f32.mxu0 0.0
    %v2153 = vand.u32 %v317, 4294901760
    %2154 = vmatmul.mubr.f32.gmra.mrb[0].mxu0 %v2153
    %v2155 = vpop.f32.mrb[0].mxu0
    %v2156 = vadd.f32 %v1891, %v2155
    %v2157 = vpop.f32.mrb[0].mxu0
    %2158 = vmatprep.mubr.f32.mxu0 0.0
    %v2159 = vand.u32 %v320, 4294901760
    %2160 = vmatmul.mubr.f32.gmra.mrb[0].mxu0 %v2159
    %v2161 = vpop.f32.mrb[0].mxu0
    %v2162 = vadd.f32 %v1897, %v2161
    %v2163 = vpop.f32.mrb[0].mxu0
    %2164 = vmatprep.mubr.f32.mxu0 0.0
    %v2165 = vand.u32 %v323, 4294901760
    %2166 = vmatmul.mubr.f32.gmra.mrb[0].mxu0 %v2165
    %v2167 = vpop.f32.mrb[0].mxu0
    %v2168 = vadd.f32 %v1903, %v2167
    %v2169 = vpop.f32.mrb[0].mxu0
    %2170 = vmatprep.mubr.f32.mxu0 0.0
    %v2171 = vand.u32 %v326, 4294901760
    %2172 = vmatmul.mubr.f32.gmra.mrb[0].mxu0 %v2171
    %v2173 = vpop.f32.mrb[0].mxu0
    %v2174 = vadd.f32 %v1909, %v2173
    %v2175 = vpop.f32.mrb[0].mxu0
    %2176 = vmatprep.mubr.f32.mxu0 0.0
    %v2177 = vand.u32 %v329, 4294901760
    %2178 = vmatmul.mubr.f32.gmra.mrb[0].mxu0 %v2177
    %v2179 = vpop.f32.mrb[0].mxu0
    %v2180 = vadd.f32 %v1915, %v2179
    %v2181 = vpop.f32.mrb[0].mxu0
    %2182 = vmatprep.mubr.f32.mxu0 0.0
    %v2183 = vand.u32 %v332, 4294901760
    %2184 = vmatmul.mubr.f32.gmra.mrb[0].mxu0 %v2183
    %v2185 = vpop.f32.mrb[0].mxu0
    %v2186 = vadd.f32 %v1921, %v2185
    %v2187 = vpop.f32.mrb[0].mxu0
    %2188 = vmatprep.mubr.f32.mxu0 0.0
    %v2189 = vand.u32 %v335, 4294901760
    %2190 = vmatmul.mubr.f32.gmra.mrb[0].mxu0 %v2189
    %v2191 = vpop.f32.mrb[0].mxu0
    %v2192 = vadd.f32 %v1927, %v2191
    %v2193 = vpop.f32.mrb[0].mxu0
    %2194 = vmatprep.mubr.f32.mxu0 0.0
    %v2195 = vand.u32 %v338, 4294901760
    %2196 = vmatmul.mubr.f32.gmra.mrb[0].mxu0 %v2195
    %v2197 = vpop.f32.mrb[0].mxu0
    %v2198 = vadd.f32 %v1933, %v2197
    %v2199 = vpop.f32.mrb[0].mxu0
    %2200 = vmatprep.mubr.f32.mxu0 0.0
    %v2201 = vand.u32 %v341, 4294901760
    %2202 = vmatmul.mubr.f32.gmra.mrb[0].mxu0 %v2201
    %v2203 = vpop.f32.mrb[0].mxu0
    %v2204 = vadd.f32 %v1939, %v2203
    %v2205 = vpop.f32.mrb[0].mxu0
    %2206 = vmatprep.mubr.f32.mxu0 0.0
    %v2207 = vand.u32 %v344, 4294901760
    %2208 = vmatmul.mubr.f32.gmra.mrb[0].mxu0 %v2207
    %v2209 = vpop.f32.mrb[0].mxu0
    %v2210 = vadd.f32 %v1945, %v2209
    %v2211 = vpop.f32.mrb[0].mxu0
    %2212 = vmatprep.mubr.f32.mxu0 0.0
    %v2213 = vand.u32 %v347, 4294901760
    %2214 = vmatmul.mubr.f32.gmra.mrb[0].mxu0 %v2213
    %v2215 = vpop.f32.mrb[0].mxu0
    %v2216 = vadd.f32 %v1951, %v2215
    %v2217 = vpop.f32.mrb[0].mxu0
    %2218 = vdwg.mxu0
    %2219 = vst [vmem:[#allocation2] sm:$0xff] %v2030
    %2220 = vst [vmem:[#allocation2 + $0x8] sm:$0xff] %v2036
    %2221 = vst [vmem:[#allocation2 + $0x10] sm:$0xff] %v2042
    %2222 = vst [vmem:[#allocation2 + $0x18] sm:$0xff] %v2048
    %2223 = vst [vmem:[#allocation2 + $0x20] sm:$0xff] %v2054
    %2224 = vst [vmem:[#allocation2 + $0x28] sm:$0xff] %v2060
    %2225 = vst [vmem:[#allocation2 + $0x30] sm:$0xff] %v2066
    %2226 = vst [vmem:[#allocation2 + $0x38] sm:$0xff] %v2072
    %2227 = vst [vmem:[#allocation2 + $0x40] sm:$0xff] %v2078
    %2228 = vst [vmem:[#allocation2 + $0x48] sm:$0xff] %v2084
    %2229 = vst [vmem:[#allocation2 + $0x50] sm:$0xff] %v2090
    %2230 = vst [vmem:[#allocation2 + $0x58] sm:$0xff] %v2096
    %2231 = vst [vmem:[#allocation2 + $0x60] sm:$0xff] %v2102
    %2232 = vst [vmem:[#allocation2 + $0x68] sm:$0xff] %v2108
    %2233 = vst [vmem:[#allocation2 + $0x70] sm:$0xff] %v2114
    %2234 = vst [vmem:[#allocation2 + $0x78] sm:$0xff] %v2120
    %2235 = vst [vmem:[#allocation2 + $0x80] sm:$0xff] %v2126
    %2236 = vst [vmem:[#allocation2 + $0x88] sm:$0xff] %v2132
    %2237 = vst [vmem:[#allocation2 + $0x90] sm:$0xff] %v2138
    %2238 = vst [vmem:[#allocation2 + $0x98] sm:$0xff] %v2144
    %2239 = vst [vmem:[#allocation2 + $0xa0] sm:$0xff] %v2150
    %2240 = vst [vmem:[#allocation2 + $0xa8] sm:$0xff] %v2156
    %2241 = vst [vmem:[#allocation2 + $0xb0] sm:$0xff] %v2162
    %2242 = vst [vmem:[#allocation2 + $0xb8] sm:$0xff] %v2168
    %2243 = vst [vmem:[#allocation2 + $0xc0] sm:$0xff] %v2174
    %2244 = vst [vmem:[#allocation2 + $0xc8] sm:$0xff] %v2180
    %2245 = vst [vmem:[#allocation2 + $0xd0] sm:$0xff] %v2186
    %2246 = vst [vmem:[#allocation2 + $0xd8] sm:$0xff] %v2192
    %2247 = vst [vmem:[#allocation2 + $0xe0] sm:$0xff] %v2198
    %2248 = vst [vmem:[#allocation2 + $0xe8] sm:$0xff] %v2204
    %2249 = vst [vmem:[#allocation2 + $0xf0] sm:$0xff] %v2210
    %2250 = vst [vmem:[#allocation2 + $0xf8] sm:$0xff] %v2216
    // Predicated region
    $region18: #{tpu_custom_call.1} parent=1 // pred_check
      _
    $region19: #{tpu_custom_call.1} parent=1 // pred_check_branch
      %2252 = sbr.rel (0) target = $region21
    $region20: #{tpu_custom_call.1} parent=1 // pred_region
      %s2254 = ssub.s32 4096, 4096
      %2255 = vsyncadd [#allocation3], %s2254
      %s2256 = sshll.u32 [#allocation2], 4
      %s2257 = int_to_ptr.vmem [resolvable:$true] %s2256
      %2262 = dma.vmem_to_hbm [thread:$0]  %s2257, 4096, %s4, [#allocation3], 128, 128, 8
    $region21: #{tpu_custom_call.1} parent=1 // pred_fallthru
      _
    // Predicated region
    $region22: #{tpu_custom_call.1} parent=1 // pred_check
      _
    $region23: #{tpu_custom_call.1} parent=1 // pred_check_branch
      %2264 = sbr.rel (0) target = $region25
    $region24: #{tpu_custom_call.1} parent=1 // pred_region
      %2265 = dma.done [#allocation3], 4096
    $region25: #{tpu_custom_call.1} parent=1 // pred_fallthru
      _
    %2266 = vsyncpa [#allocation3], 1

</llo_original>
